<compile_context>
chip_gen: v6e
topology: v6e:2x2x1
jax: 0.10.0
libtpu: 0.0.40
codegen_flags: <defaults>
</compile_context>

<pallas_src>
import jax
import jax.numpy as jnp
from jax import lax
from jax.experimental import pallas as pl
from jax.experimental.pallas import tpu as pltpu


# ----------------------------------------------------------------------------- kernel
def repconv_kernel(x_ref, w_ref, b_ref, o_ref):
    """x_ref : (Hq+2, Wo+2, C1p)  padded input image for this batch element (VMEM resident)
       w_ref : (3, 3*C1p, C2p)    fused weights, dx folded into the contraction (K) dim
       b_ref : (1, C2p)           fused bias of both branches (f32)
       o_ref : (tile_h, Wo, C2p)  output row tile."""
    tile_h, Wo, C2p = o_ref.shape
    C1p = w_ref.shape[1] // 3

    h = pl.program_id(1)
    row0 = pl.multiple_of(h * tile_h, tile_h)

    # Three dx-shifted halo slabs, sliced straight from the resident image ref
    # (no full-window materialization), lane-concatenated into one K-folded MXU
    # operand with K = 3*C1p.  Wo % 8 == 0 and C1p % 128 == 0 keep the reshape
    # layout-free and the concat lane-aligned.
    slabs = []
    for dx in range(3):
        slab = x_ref[pl.ds(row0, tile_h + 2), dx:dx + Wo, :]        # (tile_h+2, Wo, C1p)
        slabs.append(slab.reshape((tile_h + 2) * Wo, C1p))
    big = jnp.concatenate(slabs, axis=-1)                           # ((tile_h+2)*Wo, 3*C1p)

    # 3 matmuls (one per dy) with a chained f32 value accumulator: stays on the
    # MXU result path / vregs, one store per grid step (no scratch RMW passes).
    acc = None
    for dy in range(3):
        patch = big[dy * Wo: dy * Wo + tile_h * Wo]                 # major-dim slice: free
        contrib = jnp.dot(patch, w_ref[dy], preferred_element_type=jnp.float32)
        acc = contrib if acc is None else acc + contrib

    # Bias add in f32; SiLU epilogue in the output dtype (bf16 VPU/EUP on v6e/v7x).
    s = (acc + b_ref[...]).astype(o_ref.dtype)
    y = s * jax.nn.sigmoid(s)
    o_ref[...] = y.reshape(tile_h, Wo, C2p).astype(o_ref.dtype)


# ----------------------------------------------------------------------------- glue
def _round_up(x, m):
    return (x + m - 1) // m * m


def _vmem_capacity_bytes():
    """Physical VMEM per TensorCore (128 MiB v5e/v6e, 64 MiB v7x)."""
    try:
        cap = getattr(pltpu.get_tpu_info(), "vmem_capacity_bytes", None)
        if cap:
            return int(cap)
    except Exception:
        pass
    return 64 * 1024 * 1024          # conservative default (v7x per-TC)


def fuse_bn(w_oihw, gamma, beta, rmean, rvar, eps=1e-5):
    """Fold eval-mode BatchNorm2d into the preceding (bias-free) conv."""
    scale = gamma / jnp.sqrt(rvar + eps)                 # (C2,)
    w_fused = w_oihw * scale[:, None, None, None]        # (C2, C1, kh, kw)
    b_fused = beta - rmean * scale                       # (C2,)
    return w_fused, b_fused


def repconv_apply_nhwc(x_nhwc, w3_oihw, bn1, w1_oihw, bn2, *,
                       compute_dtype=jnp.bfloat16, out_dtype=None,
                       tile_h=None, eps=1e-5):
    """RepConv forward, NHWC in / NHWC out. x_nhwc: (B, H, W, C1) -> (B, H, W, C2)."""
    B, H, W, C1 = x_nhwc.shape
    C2 = w3_oihw.shape[0]
    out_dtype = compute_dtype if out_dtype is None else out_dtype

    C1p = _round_up(C1, 128)         # lane-pad channels
    C2p = _round_up(C2, 128)
    Wo = _round_up(W, 8)             # sublane-pad width (layout-free reshapes)

    # Fuse each BN into its conv, then fold the 1x1 branch into the 3x3 center
    # tap (exact re-parametrization -> one conv, 9 taps total).
    w3f, b3 = fuse_bn(w3_oihw, *bn1, eps=eps)            # (C2, C1, 3, 3)
    w1f, b1 = fuse_bn(w1_oihw, *bn2, eps=eps)            # (C2, C1, 1, 1)
    w3f = w3f.at[:, :, 1, 1].add(w1f[:, :, 0, 0])
    bias = (b3 + b1).astype(jnp.float32)

    # HWIO, lane-padded, dx folded into the contraction dim:
    #   wpk[dy, dx*C1p + ci, co] = W[dy, dx, ci, co]
    w_hwio = jnp.transpose(w3f, (2, 3, 1, 0))            # (3, 3, C1, C2)
    w_hwio = jnp.pad(w_hwio, ((0, 0), (0, 0), (0, C1p - C1), (0, C2p - C2)))
    wpk = w_hwio.reshape(3, 3 * C1p, C2p).astype(compute_dtype)
    bias_p = jnp.pad(bias, (0, C2p - C2)).reshape(1, C2p)

    # ---- generation-aware row-tile selection (keep the f32 accumulator small so
    #      the chained adds stay near the register file; the grid is the M-chunking).
    vmem_cap = _vmem_capacity_bytes()
    cap_budget = int(0.75 * vmem_cap)
    dsize = jnp.dtype(compute_dtype).itemsize
    osize = jnp.dtype(out_dtype).itemsize
    if tile_h is None:
        acc_budget = (1 << 20) if vmem_cap <= 64 * 1024 * 1024 else (2 << 20)
        tile_h = int(max(1, min(H, acc_budget // (Wo * C2p * 4))))
    tile_h = int(max(1, min(tile_h, H)))

    def _footprint(th):
        hq = _round_up(H, th)
        est = (2 * (hq + 2) * (Wo + 2) * C1p * dsize     # resident image (double-buffered by Pallas)
               + 2 * 3 * 3 * C1p * C2p * dsize           # packed weights (double-buffered too)
               + 2 * C2p * 4                             # bias
               + 2 * th * Wo * C2p * osize               # output tile (double-buffered)
               + (th + 2) * Wo * 3 * C1p * dsize         # K-folded operand
               + 2 * th * Wo * C2p * 4)                  # f32 accumulator values
        return hq, est

    Hq, est = _footprint(tile_h)
    while est > cap_budget and tile_h > 1:
        tile_h = max(1, tile_h // 2)
        Hq, est = _footprint(tile_h)
    n_h = Hq // tile_h
    # TODO(synk): for very large feature maps on v7x the resident image itself can
    # exceed VMEM; switch in_specs[0] to memory_space=pl.ANY with a manually
    # double-buffered (tile_h+2)-row halo window (P4), and single-buffer the
    # constant-index weight/bias blocks (pipeline_mode=pl.Buffered(1)).

    vmem_limit = int(min(max(2 * est, 32 * 1024 * 1024), cap_budget))

    # Single pad: 1-px spatial halo + row/col tile padding + channel lane padding.
    x_p = jnp.pad(x_nhwc.astype(compute_dtype),
                  ((0, 0), (1, 1 + Hq - H), (1, 1 + Wo - W), (0, C1p - C1)))

    cost = pl.CostEstimate(
        flops=int(2 * 9 * B * Hq * Wo * C1p * C2p),
        transcendentals=int(B * Hq * Wo * C2p),
        bytes_accessed=int(x_p.size * dsize + wpk.size * dsize + bias_p.size * 4
                           + B * Hq * Wo * C2p * osize))

    out = pl.pallas_call(
        repconv_kernel,
        out_shape=jax.ShapeDtypeStruct((B, Hq, Wo, C2p), out_dtype),
        grid_spec=pltpu.PrefetchScalarGridSpec(
            num_scalar_prefetch=0,
            grid=(B, n_h),
            in_specs=[
                # Per-batch padded image; block index independent of h -> fetched
                # once per image and kept VMEM-resident across the row axis.
                pl.BlockSpec((None, Hq + 2, Wo + 2, C1p), lambda b, h: (b, 0, 0, 0)),
                pl.BlockSpec((3, 3 * C1p, C2p), lambda b, h: (0, 0, 0)),
                pl.BlockSpec((1, C2p), lambda b, h: (0, 0)),
            ],
            out_specs=pl.BlockSpec((None, tile_h, Wo, C2p),
                                   lambda b, h: (b, h, 0, 0)),
        ),
        compiler_params=pltpu.CompilerParams(
            # Megacore shards over images; row axis serial so both TensorCores
            # don't each pull and hold the same resident image.
            dimension_semantics=("parallel", "arbitrary"),
            vmem_limit_bytes=vmem_limit),
        cost_estimate=cost,
    )(x_p, wpk, bias_p)

    if (Hq, Wo, C2p) != (H, W, C2):
        out = out[:, :H, :W, :C2]
    return out


def repconv_apply(x_nchw, w3_oihw, bn1, w1_oihw, bn2, **kw):
    """NCHW wrapper matching the PyTorch module signature."""
    # TODO(synk): keep NHWC end-to-end when the surrounding graph allows; these
    # transposes are PyTorch-layout glue, not part of the kernel.
    x_nhwc = jnp.transpose(x_nchw, (0, 2, 3, 1))
    y = repconv_apply_nhwc(x_nhwc, w3_oihw, bn1, w1_oihw, bn2, **kw)
    return jnp.transpose(y, (0, 3, 1, 2))


# ----------------------------------------------------------------------------- reference
def reference(x_nchw, w3_oihw, bn1, w1_oihw, bn2, eps=1e-5):
    """Pure-JAX f32 reference matching the PyTorch forward (eval-mode BN)."""
    def bn(y, gamma, beta, rmean, rvar):
        inv = gamma / jnp.sqrt(rvar + eps)
        return (y - rmean[None, :, None, None]) * inv[None, :, None, None] \
            + beta[None, :, None, None]

    y1 = lax.conv_general_dilated(x_nchw, w3_oihw, (1, 1), ((1, 1), (1, 1)),
                                  dimension_numbers=("NCHW", "OIHW", "NCHW"))
    y1 = bn(y1, *bn1)
    y2 = lax.conv_general_dilated(x_nchw, w1_oihw, (1, 1), ((0, 0), (0, 0)),
                                  dimension_numbers=("NCHW", "OIHW", "NCHW"))
    y2 = bn(y2, *bn2)
    s = y1 + y2  # id_out = 0 (bn=False default)
    return s * jax.nn.sigmoid(s)


# ----------------------------------------------------------------------------- test
if __name__ == "__main__":
    B, C1, C2, H, W = 2, 4, 8, 16, 16

    key = jax.random.PRNGKey(0)
    ks = jax.random.split(key, 11)

    x = jax.random.normal(ks[0], (B, C1, H, W), jnp.float32)

    # conv1: 3x3 conv (no bias) + BN
    w3 = jax.random.normal(ks[1], (C2, C1, 3, 3), jnp.float32) * 0.1
    bn1 = (jax.random.uniform(ks[2], (C2,), minval=0.5, maxval=1.5),   # gamma
           jax.random.normal(ks[3], (C2,)) * 0.1,                      # beta
           jax.random.normal(ks[4], (C2,)) * 0.1,                      # running_mean
           jax.random.uniform(ks[5], (C2,), minval=0.5, maxval=1.5))   # running_var

    # conv2: 1x1 conv (no bias) + BN
    w1 = jax.random.normal(ks[6], (C2, C1, 1, 1), jnp.float32) * 0.1
    bn2 = (jax.random.uniform(ks[7], (C2,), minval=0.5, maxval=1.5),
           jax.random.normal(ks[8], (C2,)) * 0.1,
           jax.random.normal(ks[9], (C2,)) * 0.1,
           jax.random.uniform(ks[10], (C2,), minval=0.5, maxval=1.5))

    # TODO(synk): optional `bn=True` identity-BN branch not exercised (module
    # default bn=False -> id_out = 0).

    ref = reference(x, w3, bn1, w1, bn2)

    # 1) f32 compute path, explicit row tiling (grid (B, 2)) -> exact match.
    out_f32 = jax.block_until_ready(
        repconv_apply(x, w3, bn1, w1, bn2, compute_dtype=jnp.float32, tile_h=8))
    assert out_f32.shape == (B, C2, H, W)
    assert out_f32.dtype == jnp.float32
    assert jnp.allclose(out_f32, ref, rtol=1e-4, atol=1e-4), \
        f"f32 max err {jnp.max(jnp.abs(out_f32 - ref))}"

    # 2) default bf16 MXU path (auto row tile, bf16 output) -> bf16 tolerance.
    out_bf16 = jax.block_until_ready(repconv_apply(x, w3, bn1, w1, bn2))
    assert out_bf16.shape == (B, C2, H, W)
    err_bf = jnp.max(jnp.abs(out_bf16.astype(jnp.float32) - ref))
    assert err_bf < 6e-2, f"bf16 max err {err_bf}"

    print("KERNEL_OK")
</pallas_src>

<mosaic_0001>
module attributes {stable_mosaic.version = 11 : i64} {
  func.func @repconv_kernel(%arg0: i32, %arg1: i32, %arg2: memref<1x18x18x128xf32, #tpu.memory_space<vmem>>, %arg3: memref<3x384x128xf32, #tpu.memory_space<vmem>>, %arg4: memref<1x128xf32, #tpu.memory_space<vmem>>, %arg5: memref<1x8x16x128xf32, #tpu.memory_space<vmem>>) attributes {dimension_semantics = [#tpu.dimension_semantics<parallel>, #tpu.dimension_semantics<arbitrary>], iteration_bounds = array<i64: 2, 2>, scalar_prefetch = 0 : i64, scratch_operands = 0 : i64, tpu.core_type = #tpu.core_type<tc>, window_params = [{transform_indices = @transform_0, window_bounds = array<i64: 1, 18, 18, 128>}, {pipeline_mode = #tpu.pipeline_mode<synchronous>, transform_indices = @transform_1, window_bounds = array<i64: 3, 384, 128>}, {pipeline_mode = #tpu.pipeline_mode<synchronous>, transform_indices = @transform_2, window_bounds = array<i64: 1, 128>}, {transform_indices = @transform_3, window_bounds = array<i64: 1, 8, 16, 128>}]} {
    %c8_i32 = arith.constant 8 : i32
    %0 = arith.muli %arg1, %c8_i32 : i32
    %1 = tpu.assume_multiple %0, 8 : i32
    %c0 = arith.constant 0 : index
    %2 = arith.index_cast %1 : i32 to index
    %c0_0 = arith.constant 0 : index
    %c0_1 = arith.constant 0 : index
    %3 = vector.load %arg2[%c0, %2, %c0_0, %c0_1] : memref<1x18x18x128xf32, #tpu.memory_space<vmem>>, vector<1x10x16x128xf32>
    %4 = vector.shape_cast %3 : vector<1x10x16x128xf32> to vector<10x16x128xf32>
    %5 = vector.shape_cast %4 : vector<10x16x128xf32> to vector<160x128xf32>
    %c0_2 = arith.constant 0 : index
    %6 = arith.index_cast %1 : i32 to index
    %c1 = arith.constant 1 : index
    %c0_3 = arith.constant 0 : index
    %7 = vector.load %arg2[%c0_2, %6, %c1, %c0_3] : memref<1x18x18x128xf32, #tpu.memory_space<vmem>>, vector<1x10x16x128xf32>
    %8 = vector.shape_cast %7 : vector<1x10x16x128xf32> to vector<10x16x128xf32>
    %9 = vector.shape_cast %8 : vector<10x16x128xf32> to vector<160x128xf32>
    %c0_4 = arith.constant 0 : index
    %10 = arith.index_cast %1 : i32 to index
    %c2 = arith.constant 2 : index
    %c0_5 = arith.constant 0 : index
    %11 = vector.load %arg2[%c0_4, %10, %c2, %c0_5] : memref<1x18x18x128xf32, #tpu.memory_space<vmem>>, vector<1x10x16x128xf32>
    %12 = vector.shape_cast %11 : vector<1x10x16x128xf32> to vector<10x16x128xf32>
    %13 = vector.shape_cast %12 : vector<10x16x128xf32> to vector<160x128xf32>
    %14 = tpu.concatenate %5, %9, %13 in 1 : vector<160x128xf32>, vector<160x128xf32>, vector<160x128xf32> -> vector<160x384xf32>
    %15 = vector.extract_strided_slice %14 {offsets = [0, 0], sizes = [128, 384], strides = [1, 1]} : vector<160x384xf32> to vector<128x384xf32>
    %c0_6 = arith.constant 0 : index
    %c0_7 = arith.constant 0 : index
    %c0_8 = arith.constant 0 : index
    %16 = vector.load %arg3[%c0_6, %c0_7, %c0_8] : memref<3x384x128xf32, #tpu.memory_space<vmem>>, vector<1x384x128xf32>
    %17 = vector.shape_cast %16 : vector<1x384x128xf32> to vector<384x128xf32>
    %cst = arith.constant dense<0.000000e+00> : vector<128x128xf32>
    %18 = tpu.matmul %15, %17, %cst {dimension_numbers = #tpu.dot_dimension_numbers<[1], [0], [0], [1], [0, 0, 1, 1], [], []>} : vector<128x384xf32>, vector<384x128xf32>, vector<128x128xf32> -> vector<128x128xf32>
    %19 = vector.extract_strided_slice %14 {offsets = [16, 0], sizes = [128, 384], strides = [1, 1]} : vector<160x384xf32> to vector<128x384xf32>
    %c1_9 = arith.constant 1 : index
    %c0_10 = arith.constant 0 : index
    %c0_11 = arith.constant 0 : index
    %20 = vector.load %arg3[%c1_9, %c0_10, %c0_11] : memref<3x384x128xf32, #tpu.memory_space<vmem>>, vector<1x384x128xf32>
    %21 = vector.shape_cast %20 : vector<1x384x128xf32> to vector<384x128xf32>
    %cst_12 = arith.constant dense<0.000000e+00> : vector<128x128xf32>
    %22 = tpu.matmul %19, %21, %cst_12 {dimension_numbers = #tpu.dot_dimension_numbers<[1], [0], [0], [1], [0, 0, 1, 1], [], []>} : vector<128x384xf32>, vector<384x128xf32>, vector<128x128xf32> -> vector<128x128xf32>
    %23 = arith.addf %18, %22 : vector<128x128xf32>
    %24 = vector.extract_strided_slice %14 {offsets = [32, 0], sizes = [128, 384], strides = [1, 1]} : vector<160x384xf32> to vector<128x384xf32>
    %c2_13 = arith.constant 2 : index
    %c0_14 = arith.constant 0 : index
    %c0_15 = arith.constant 0 : index
    %25 = vector.load %arg3[%c2_13, %c0_14, %c0_15] : memref<3x384x128xf32, #tpu.memory_space<vmem>>, vector<1x384x128xf32>
    %26 = vector.shape_cast %25 : vector<1x384x128xf32> to vector<384x128xf32>
    %cst_16 = arith.constant dense<0.000000e+00> : vector<128x128xf32>
    %27 = tpu.matmul %24, %26, %cst_16 {dimension_numbers = #tpu.dot_dimension_numbers<[1], [0], [0], [1], [0, 0, 1, 1], [], []>} : vector<128x384xf32>, vector<384x128xf32>, vector<128x128xf32> -> vector<128x128xf32>
    %28 = arith.addf %23, %27 : vector<128x128xf32>
    %c0_17 = arith.constant 0 : index
    %c0_18 = arith.constant 0 : index
    %29 = vector.load %arg4[%c0_17, %c0_18] : memref<1x128xf32, #tpu.memory_space<vmem>>, vector<1x128xf32>
    %30 = vector.broadcast %29 : vector<1x128xf32> to vector<128x128xf32>
    %31 = arith.addf %28, %30 : vector<128x128xf32>
    %32 = arith.negf %31 : vector<128x128xf32>
    %33 = math.exp %32 : vector<128x128xf32>
    %cst_19 = arith.constant 1.000000e+00 : f32
    %34 = vector.broadcast %cst_19 : f32 to vector<128x128xf32>
    %35 = arith.addf %34, %33 : vector<128x128xf32>
    %36 = arith.divf %34, %35 : vector<128x128xf32>
    %37 = arith.mulf %31, %36 : vector<128x128xf32>
    %38 = vector.shape_cast %37 : vector<128x128xf32> to vector<8x16x128xf32>
    %c0_20 = arith.constant 0 : index
    %c0_21 = arith.constant 0 : index
    %c0_22 = arith.constant 0 : index
    %c0_23 = arith.constant 0 : index
    %39 = vector.load %arg5[%c0_20, %c0_21, %c0_22, %c0_23] : memref<1x8x16x128xf32, #tpu.memory_space<vmem>>, vector<1x8x16x128xf32>
    %40 = vector.shape_cast %39 : vector<1x8x16x128xf32> to vector<8x16x128xf32>
    %41 = vector.shape_cast %38 : vector<8x16x128xf32> to vector<1x8x16x128xf32>
    tpu.vector_store %arg5[%c0_20, %c0_21, %c0_22, %c0_23], %41 {strides = array<i32>} : memref<1x8x16x128xf32, #tpu.memory_space<vmem>>, vector<1x8x16x128xf32>,
    return
  }
  func.func @transform_0(%arg0: i32, %arg1: i32) -> (i32, i32, i32, i32) {
    %c0_i32 = arith.constant 0 : i32
    %c0_i32_0 = arith.constant 0 : i32
    %c0_i32_1 = arith.constant 0 : i32
    %c0_i32_2 = arith.constant 0 : i32
    return %arg0, %c0_i32, %c0_i32_0, %c0_i32_1 : i32, i32, i32, i32
  }
  func.func @transform_1(%arg0: i32, %arg1: i32) -> (i32, i32, i32) {
    %c0_i32 = arith.constant 0 : i32
    %c0_i32_0 = arith.constant 0 : i32
    %c0_i32_1 = arith.constant 0 : i32
    %c0_i32_2 = arith.constant 0 : i32
    return %c0_i32, %c0_i32_0, %c0_i32_1 : i32, i32, i32
  }
  func.func @transform_2(%arg0: i32, %arg1: i32) -> (i32, i32) {
    %c0_i32 = arith.constant 0 : i32
    %c0_i32_0 = arith.constant 0 : i32
    %c0_i32_1 = arith.constant 0 : i32
    return %c0_i32, %c0_i32_0 : i32, i32
  }
  func.func @transform_3(%arg0: i32, %arg1: i32) -> (i32, i32, i32, i32) {
    %c0_i32 = arith.constant 0 : i32
    %c0_i32_0 = arith.constant 0 : i32
    %c0_i32_1 = arith.constant 0 : i32
    return %arg0, %arg1, %c0_i32, %c0_i32_0 : i32, i32, i32, i32
  }
}

</mosaic_0001>

<llo_original>
// kernel: tpu_custom_call.1
$region0: #{tpu_custom_call.1}
  #allocation0 [shape = 'u32[]', space=smem, size = 0x4, offset = 0x4, fixed_abs, tag = 'smem constant byte address 0x4 - core index']
  #allocation1 [shape = 'u32[144,128]{1,0:T(1,128)}', space=vmem, size = 0x12000, scoped, tag = 'internal scratch']
  %s0 = inlined_call_operand.vmem [shape: f32[2,18,18,128], index: 0, kind: input, shape index: {}]
  %s1 = inlined_call_operand.vmem [shape: f32[3,384,128], index: 1, kind: input, shape index: {}]
  %s2 = inlined_call_operand.vmem [shape: f32[1,128], index: 2, kind: input, shape index: {}]
  %s3 = inlined_call_operand.hbm [shape: f32[2,16,16,128], index: 3, kind: output, shape index: {}]
  %s4 = sld [smem:[#allocation0]]
  $region45: #{tpu_custom_call.1} parent=0
    _
  %s6 = ssub.s32 1, %s4
  %s7 = scalar_select 0, %s6, %s4
  $region1: #{tpu_custom_call.1} parent=0
    #allocation2 [shape = 'u8[131072]{0}', space=vmem, size = 0x20000, scoped, tag = 'output window, operand 0']
    #allocation3 [shape = 's32[2]{0}', space=sflag, size = 0x8, scoped, tag = 'scoped memory for tpu_custom_call.1']
    %8 = vsyncpa [#allocation3], 0
    %s9 = scalar_lea.sflag [#allocation3], 1
    %10 = vsyncpa %s9, 0
    loop: start=0, step=1, limit=6
    $region2: #{tpu_custom_call.1} parent=1 // loop_pre_header
      _
    $region3: #{tpu_custom_call.1} parent=1 // loop_header
      %s12 = sphi 0, %s16
      %p13 = scmp.ge.s32.totalorder %s12, 6
      %s19 = sphi 0, %s31
      %s20 = sphi 0, %s27
      %s21 = sphi 0, %s19
      %s22 = sphi 0, %s20
      %s23 = sphi 0, %s21
      %s24 = sphi 0, %s22
      %s34 = sphi 0, %s36
      %s37 = sphi 0, %s34
      %s38 = sphi 0, %s37
      %s54 = sphi 0, %s38
      %s58 = sphi 0, %s58
      %s60 = sphi 0, %s58
      %s61 = sphi 0, %s60
      %s75 = sphi 0, %s61
      %s79 = sphi 0, %s79
      %s81 = sphi 0, %s79
      %s82 = sphi 0, %s81
      %s96 = sphi 0, %s82
      %s104 = sphi 0, %s106
      %s107 = sphi 0, %s104
      %s108 = sphi 0, %s107
      %s124 = sphi 0, %s108
    $region4: #{tpu_custom_call.1} parent=1 // loop_header_branch
      %15 = sbr.rel (%p13) target = $region8
    $region5: #{tpu_custom_call.1} parent=1 // loop_body
      %s17 = ssub.s32 %s12, 1
      %s18 = ssub.s32 %s12, 2
      %s25 = sadd.s32 1, %s20
      %p26 = scmp.ge.s32.totalorder %s25, 2
      %s27 = scalar_select %p26, 0, %s25
      %s28 = sadd.s32 1, %s19
      %s29 = scalar_select %p26, %s28, %s19
      %p30 = scmp.ge.s32.totalorder %s29, 2
      %s31 = scalar_select %p30, 0, %s29
      %s32 = ssub.s32 %s19, %s31
      %p33 = scmp.eq.s32.totalorder %s32, 0
      %s35 = sadd.s32 %s34, 1
      %s36 = scalar_select %p33, %s34, %s35
      %p39 = pneg %p33
      %p40 = scmp.eq.s32.totalorder %s12, 3
      %p41 = por %p39, %p40
      %p42 = scmp.ne.s32.totalorder %s34, %s37
      %p43 = scmp.eq.s32.totalorder %s12, 0
      %p44 = por %p42, %p43
      %p45 = scmp.ne.s32.totalorder %s34, %s37
      %p46 = scmp.eq.s32.totalorder %s17, 3
      %p47 = por %p45, %p46
      %p48 = scmp.ne.s32.totalorder %s37, %s38
      %p49 = scmp.eq.s32.totalorder %s17, 0
      %p50 = por %p48, %p49
      %p51 = scmp.ne.s32.totalorder %s37, %s38
      %p52 = scmp.eq.s32.totalorder %s18, 3
      %p53 = por %p51, %p52
      %p55 = scmp.ne.s32.totalorder %s38, %s54
      %p56 = scmp.eq.s32.totalorder %s18, 0
      %p57 = por %p55, %p56
      %s59 = sadd.s32 %s58, 1
      %p62 = scmp.eq.s32.totalorder %s12, 3
      %p63 = scmp.ne.s32.totalorder %s58, %s60
      %p64 = scmp.eq.s32.totalorder %s12, 0
      %p65 = por %p63, %p64
      %p66 = scmp.ne.s32.totalorder %s58, %s60
      %p67 = scmp.eq.s32.totalorder %s17, 3
      %p68 = por %p66, %p67
      %p69 = scmp.ne.s32.totalorder %s60, %s61
      %p70 = scmp.eq.s32.totalorder %s17, 0
      %p71 = por %p69, %p70
      %p72 = scmp.ne.s32.totalorder %s60, %s61
      %p73 = scmp.eq.s32.totalorder %s18, 3
      %p74 = por %p72, %p73
      %p76 = scmp.ne.s32.totalorder %s61, %s75
      %p77 = scmp.eq.s32.totalorder %s18, 0
      %p78 = por %p76, %p77
      %s80 = sadd.s32 %s79, 1
      %p83 = scmp.eq.s32.totalorder %s12, 3
      %p84 = scmp.ne.s32.totalorder %s79, %s81
      %p85 = scmp.eq.s32.totalorder %s12, 0
      %p86 = por %p84, %p85
      %p87 = scmp.ne.s32.totalorder %s79, %s81
      %p88 = scmp.eq.s32.totalorder %s17, 3
      %p89 = por %p87, %p88
      %p90 = scmp.ne.s32.totalorder %s81, %s82
      %p91 = scmp.eq.s32.totalorder %s17, 0
      %p92 = por %p90, %p91
      %p93 = scmp.ne.s32.totalorder %s81, %s82
      %p94 = scmp.eq.s32.totalorder %s18, 3
      %p95 = por %p93, %p94
      %p97 = scmp.ne.s32.totalorder %s82, %s96
      %p98 = scmp.eq.s32.totalorder %s18, 0
      %p99 = por %p97, %p98
      %s100 = ssub.s32 %s19, %s31
      %s101 = ssub.s32 %s20, %s27
      %s102 = sor.u32 %s100, %s101
      %p103 = scmp.eq.s32.totalorder %s102, 0
      %s105 = sadd.s32 %s104, 1
      %s106 = scalar_select %p103, %s104, %s105
      %p109 = pneg %p103
      %p110 = scmp.eq.s32.totalorder %s12, 3
      %p111 = por %p109, %p110
      %p112 = scmp.ne.s32.totalorder %s104, %s107
      %p113 = scmp.eq.s32.totalorder %s12, 0
      %p114 = por %p112, %p113
      %p115 = scmp.ne.s32.totalorder %s104, %s107
      %p116 = scmp.eq.s32.totalorder %s17, 3
      %p117 = por %p115, %p116
      %p118 = scmp.ne.s32.totalorder %s107, %s108
      %p119 = scmp.eq.s32.totalorder %s17, 0
      %p120 = por %p118, %p119
      %p121 = scmp.ne.s32.totalorder %s107, %s108
      %p122 = scmp.eq.s32.totalorder %s18, 3
      %p123 = por %p121, %p122
      %p125 = scmp.ne.s32.totalorder %s108, %s124
      %p126 = scmp.eq.s32.totalorder %s18, 0
      %p127 = por %p125, %p126
      %p128 = scmp.le.s32.totalorder 1, %s12
      %p129 = scmp.lt.s32.totalorder %s12, 5
      %p130 = pnand %p128, %p129
      %p131 = pneg %p130
      // Predicated region
      $region9: #{tpu_custom_call.1} parent=5 // pred_check
        _
      $region10: #{tpu_custom_call.1} parent=5 // pred_check_branch
        %133 = sbr.rel (%p130) target = $region12
      $region11: #{tpu_custom_call.1} parent=5 // pred_region
        %s134 = ssub.s32 %s12, 1
        // Predicated region
        $region13: #{tpu_custom_call.1} parent=11 // pred_check
          %p135 = pneg %p71
        $region14: #{tpu_custom_call.1} parent=11 // pred_check_branch
          %137 = sbr.rel (%p135) target = $region16
        $region15: #{tpu_custom_call.1} parent=11 // pred_region
          _
        $region16: #{tpu_custom_call.1} parent=11 // pred_fallthru
          _
        // Predicated region
        $region17: #{tpu_custom_call.1} parent=11 // pred_check
          %p138 = pneg %p92
        $region18: #{tpu_custom_call.1} parent=11 // pred_check_branch
          %140 = sbr.rel (%p138) target = $region20
        $region19: #{tpu_custom_call.1} parent=11 // pred_region
          _
        $region20: #{tpu_custom_call.1} parent=11 // pred_fallthru
          _
      $region12: #{tpu_custom_call.1} parent=5 // pred_fallthru
        _
      %p141 = scmp.lt.s32.totalorder %s12, 4
      // Predicated region
      $region21: #{tpu_custom_call.1} parent=5 // pred_check
        %p142 = pneg %p141
      $region22: #{tpu_custom_call.1} parent=5 // pred_check_branch
        %144 = sbr.rel (%p142) target = $region24
      $region23: #{tpu_custom_call.1} parent=5 // pred_region
        // Predicated region
        $region25: #{tpu_custom_call.1} parent=23 // pred_check
          %p145 = pneg %p44
        $region26: #{tpu_custom_call.1} parent=23 // pred_check_branch
          %147 = sbr.rel (%p145) target = $region28
        $region27: #{tpu_custom_call.1} parent=23 // pred_region
          %p148 = scmp.lt.s32.totalorder %s19, 1
          %s149 = scalar_select %p148, %s19, 1
          %s150 = smul.addr %s149, 54
          %s151 = smul.addr %s150, 8
          %s152 = scalar_lea.vmem %s0, %s151
        $region28: #{tpu_custom_call.1} parent=23 // pred_fallthru
          _
      $region24: #{tpu_custom_call.1} parent=5 // pred_fallthru
        _
      %p153 = scmp.le.s32.totalorder 1, %s12
      %p154 = scmp.lt.s32.totalorder %s12, 5
      %p155 = pnand %p153, %p154
      %p156 = pneg %p155
      // Predicated region
      $region29: #{tpu_custom_call.1} parent=5 // pred_check
        _
      $region30: #{tpu_custom_call.1} parent=5 // pred_check_branch
        %158 = sbr.rel (%p155) target = $region32
      $region31: #{tpu_custom_call.1} parent=5 // pred_region
        %s159 = ssub.s32 %s12, 1
        %p160 = scmp.lt.s32.totalorder %s21, 1
        %s161 = scalar_select %p160, %s21, 1
        %s162 = smul.addr %s161, 54
        %s163 = smul.addr %s162, 8
        %s164 = scalar_lea.vmem %s0, %s163
        %p165 = pneg %p50
        %p166 = pneg %p47
        %p167 = pneg %p71
        %p168 = pneg %p68
        %p169 = pneg %p92
        %p170 = pneg %p89
        %p171 = pneg %p120
        %p172 = pneg %p117
        %s173 = sand.u32 %s107, 1
        %s174 = scalar_lea.sflag [#allocation3], %s173
        %s175 = sand.u32 %s107, 1
        %s176 = smul.addr %s175, 128
        %s177 = scalar_lea.vmem [#allocation2], %s176
        %p178 = scmp.lt.s32.totalorder %s21, 1
        %s179 = scalar_select %p178, %s21, 1
        %s180 = smul.addr %s179, 54
        %s181 = smul.addr %s180, 8
        %s182 = scalar_lea.vmem %s0, %s181
        %s183 = smul.u32 8, %s22
        %s184 = smul.u32 %s22, 8
        %s185 = smul.u32 %s184, 24
        %s186 = scalar_lea.vmem %s182, %s185
        %v187 = vld [vmem:[%s186] sm:$0xff]
        %v188 = vld [vmem:[%s186 + $0x8] sm:$0xff]
        %v189 = vld [vmem:[%s186 + $0x18] sm:$0xff]
        %v190 = vld [vmem:[%s186 + $0x20] sm:$0xff]
        %v191 = vld [vmem:[%s186 + $0x30] sm:$0xff]
        %v192 = vld [vmem:[%s186 + $0x38] sm:$0xff]
        %v193 = vld [vmem:[%s186 + $0x48] sm:$0xff]
        %v194 = vld [vmem:[%s186 + $0x50] sm:$0xff]
        %v195 = vld [vmem:[%s186 + $0x60] sm:$0xff]
        %v196 = vld [vmem:[%s186 + $0x68] sm:$0xff]
        %v197 = vld [vmem:[%s186 + $0x78] sm:$0xff]
        %v198 = vld [vmem:[%s186 + $0x80] sm:$0xff]
        %v199 = vld [vmem:[%s186 + $0x90] sm:$0xff]
        %v200 = vld [vmem:[%s186 + $0x98] sm:$0xff]
        %v201 = vld [vmem:[%s186 + $0xa8] sm:$0xff]
        %v202 = vld [vmem:[%s186 + $0xb0] sm:$0xff]
        %v203 = vld [vmem:[%s186 + $0xc0] sm:$0xff]
        %v204 = vld [vmem:[%s186 + $0xc8] sm:$0xff]
        %v205 = vld [vmem:[%s186 + $0xd8] sm:$0xff]
        %v206 = vld [vmem:[%s186 + $0xe0] sm:$0xff]
        %v207 = vld [vmem:[%s186 + $0x1] sm:$0xff]
        %v208 = vld [vmem:[%s186 + $0x9] sm:$0xff]
        %v209 = vld [vmem:[%s186 + $0x19] sm:$0xff]
        %v210 = vld [vmem:[%s186 + $0x21] sm:$0xff]
        %v211 = vld [vmem:[%s186 + $0x31] sm:$0xff]
        %v212 = vld [vmem:[%s186 + $0x39] sm:$0xff]
        %v213 = vld [vmem:[%s186 + $0x49] sm:$0xff]
        %v214 = vld [vmem:[%s186 + $0x51] sm:$0xff]
        %v215 = vld [vmem:[%s186 + $0x61] sm:$0xff]
        %v216 = vld [vmem:[%s186 + $0x69] sm:$0xff]
        %v217 = vld [vmem:[%s186 + $0x79] sm:$0xff]
        %v218 = vld [vmem:[%s186 + $0x81] sm:$0xff]
        %v219 = vld [vmem:[%s186 + $0x91] sm:$0xff]
        %v220 = vld [vmem:[%s186 + $0x99] sm:$0xff]
        %v221 = vld [vmem:[%s186 + $0xa9] sm:$0xff]
        %v222 = vld [vmem:[%s186 + $0xb1] sm:$0xff]
        %v223 = vld [vmem:[%s186 + $0xc1] sm:$0xff]
        %v224 = vld [vmem:[%s186 + $0xc9] sm:$0xff]
        %v225 = vld [vmem:[%s186 + $0xd9] sm:$0xff]
        %v226 = vld [vmem:[%s186 + $0xe1] sm:$0xff]
        %v227 = vld [vmem:[%s186 + $0x2] sm:$0xff]
        %v228 = vld [vmem:[%s186 + $0xa] sm:$0xff]
        %v229 = vld [vmem:[%s186 + $0x1a] sm:$0xff]
        %v230 = vld [vmem:[%s186 + $0x22] sm:$0xff]
        %v231 = vld [vmem:[%s186 + $0x32] sm:$0xff]
        %v232 = vld [vmem:[%s186 + $0x3a] sm:$0xff]
        %v233 = vld [vmem:[%s186 + $0x4a] sm:$0xff]
        %v234 = vld [vmem:[%s186 + $0x52] sm:$0xff]
        %v235 = vld [vmem:[%s186 + $0x62] sm:$0xff]
        %v236 = vld [vmem:[%s186 + $0x6a] sm:$0xff]
        %v237 = vld [vmem:[%s186 + $0x7a] sm:$0xff]
        %v238 = vld [vmem:[%s186 + $0x82] sm:$0xff]
        %v239 = vld [vmem:[%s186 + $0x92] sm:$0xff]
        %v240 = vld [vmem:[%s186 + $0x9a] sm:$0xff]
        %v241 = vld [vmem:[%s186 + $0xaa] sm:$0xff]
        %v242 = vld [vmem:[%s186 + $0xb2] sm:$0xff]
        %v243 = vld [vmem:[%s186 + $0xc2] sm:$0xff]
        %v244 = vld [vmem:[%s186 + $0xca] sm:$0xff]
        %v245 = vld [vmem:[%s186 + $0xda] sm:$0xff]
        %v246 = vld [vmem:[%s186 + $0xe2] sm:$0xff]
        %v247 = vld [vmem:[%s1] sm:$0xff]
        %v248 = vld [vmem:[%s1 + $0x8] sm:$0xff]
        %v249 = vld [vmem:[%s1 + $0x10] sm:$0xff]
        %v250 = vld [vmem:[%s1 + $0x18] sm:$0xff]
        %v251 = vld [vmem:[%s1 + $0x20] sm:$0xff]
        %v252 = vld [vmem:[%s1 + $0x28] sm:$0xff]
        %v253 = vld [vmem:[%s1 + $0x30] sm:$0xff]
        %v254 = vld [vmem:[%s1 + $0x38] sm:$0xff]
        %v255 = vld [vmem:[%s1 + $0x40] sm:$0xff]
        %v256 = vld [vmem:[%s1 + $0x48] sm:$0xff]
        %v257 = vld [vmem:[%s1 + $0x50] sm:$0xff]
        %v258 = vld [vmem:[%s1 + $0x58] sm:$0xff]
        %v259 = vld [vmem:[%s1 + $0x60] sm:$0xff]
        %v260 = vld [vmem:[%s1 + $0x68] sm:$0xff]
        %v261 = vld [vmem:[%s1 + $0x70] sm:$0xff]
        %v262 = vld [vmem:[%s1 + $0x78] sm:$0xff]
        %v263 = vld [vmem:[%s1 + $0x80] sm:$0xff]
        %v264 = vld [vmem:[%s1 + $0x88] sm:$0xff]
        %v265 = vld [vmem:[%s1 + $0x90] sm:$0xff]
        %v266 = vld [vmem:[%s1 + $0x98] sm:$0xff]
        %v267 = vld [vmem:[%s1 + $0xa0] sm:$0xff]
        %v268 = vld [vmem:[%s1 + $0xa8] sm:$0xff]
        %v269 = vld [vmem:[%s1 + $0xb0] sm:$0xff]
        %v270 = vld [vmem:[%s1 + $0xb8] sm:$0xff]
        %v271 = vld [vmem:[%s1 + $0xc0] sm:$0xff]
        %v272 = vld [vmem:[%s1 + $0xc8] sm:$0xff]
        %v273 = vld [vmem:[%s1 + $0xd0] sm:$0xff]
        %v274 = vld [vmem:[%s1 + $0xd8] sm:$0xff]
        %v275 = vld [vmem:[%s1 + $0xe0] sm:$0xff]
        %v276 = vld [vmem:[%s1 + $0xe8] sm:$0xff]
        %v277 = vld [vmem:[%s1 + $0xf0] sm:$0xff]
        %v278 = vld [vmem:[%s1 + $0xf8] sm:$0xff]
        %v279 = vld [vmem:[%s1 + $0x100] sm:$0xff]
        %v280 = vld [vmem:[%s1 + $0x108] sm:$0xff]
        %v281 = vld [vmem:[%s1 + $0x110] sm:$0xff]
        %v282 = vld [vmem:[%s1 + $0x118] sm:$0xff]
        %v283 = vld [vmem:[%s1 + $0x120] sm:$0xff]
        %v284 = vld [vmem:[%s1 + $0x128] sm:$0xff]
        %v285 = vld [vmem:[%s1 + $0x130] sm:$0xff]
        %v286 = vld [vmem:[%s1 + $0x138] sm:$0xff]
        %v287 = vld [vmem:[%s1 + $0x140] sm:$0xff]
        %v288 = vld [vmem:[%s1 + $0x148] sm:$0xff]
        %v289 = vld [vmem:[%s1 + $0x150] sm:$0xff]
        %v290 = vld [vmem:[%s1 + $0x158] sm:$0xff]
        %v291 = vld [vmem:[%s1 + $0x160] sm:$0xff]
        %v292 = vld [vmem:[%s1 + $0x168] sm:$0xff]
        %v293 = vld [vmem:[%s1 + $0x170] sm:$0xff]
        %v294 = vld [vmem:[%s1 + $0x178] sm:$0xff]
        %s295 = scalar_lea.vmem %s1, 384
        %v296 = vld [vmem:[%s295] sm:$0xff]
        %v297 = vld [vmem:[%s295 + $0x8] sm:$0xff]
        %v298 = vld [vmem:[%s295 + $0x10] sm:$0xff]
        %v299 = vld [vmem:[%s295 + $0x18] sm:$0xff]
        %v300 = vld [vmem:[%s295 + $0x20] sm:$0xff]
        %v301 = vld [vmem:[%s295 + $0x28] sm:$0xff]
        %v302 = vld [vmem:[%s295 + $0x30] sm:$0xff]
        %v303 = vld [vmem:[%s295 + $0x38] sm:$0xff]
        %v304 = vld [vmem:[%s295 + $0x40] sm:$0xff]
        %v305 = vld [vmem:[%s295 + $0x48] sm:$0xff]
        %v306 = vld [vmem:[%s295 + $0x50] sm:$0xff]
        %v307 = vld [vmem:[%s295 + $0x58] sm:$0xff]
        %v308 = vld [vmem:[%s295 + $0x60] sm:$0xff]
        %v309 = vld [vmem:[%s295 + $0x68] sm:$0xff]
        %v310 = vld [vmem:[%s295 + $0x70] sm:$0xff]
        %v311 = vld [vmem:[%s295 + $0x78] sm:$0xff]
        %v312 = vld [vmem:[%s295 + $0x80] sm:$0xff]
        %v313 = vld [vmem:[%s295 + $0x88] sm:$0xff]
        %v314 = vld [vmem:[%s295 + $0x90] sm:$0xff]
        %v315 = vld [vmem:[%s295 + $0x98] sm:$0xff]
        %v316 = vld [vmem:[%s295 + $0xa0] sm:$0xff]
        %v317 = vld [vmem:[%s295 + $0xa8] sm:$0xff]
        %v318 = vld [vmem:[%s295 + $0xb0] sm:$0xff]
        %v319 = vld [vmem:[%s295 + $0xb8] sm:$0xff]
        %v320 = vld [vmem:[%s295 + $0xc0] sm:$0xff]
        %v321 = vld [vmem:[%s295 + $0xc8] sm:$0xff]
        %v322 = vld [vmem:[%s295 + $0xd0] sm:$0xff]
        %v323 = vld [vmem:[%s295 + $0xd8] sm:$0xff]
        %v324 = vld [vmem:[%s295 + $0xe0] sm:$0xff]
        %v325 = vld [vmem:[%s295 + $0xe8] sm:$0xff]
        %v326 = vld [vmem:[%s295 + $0xf0] sm:$0xff]
        %v327 = vld [vmem:[%s295 + $0xf8] sm:$0xff]
        %v328 = vld [vmem:[%s295 + $0x100] sm:$0xff]
        %v329 = vld [vmem:[%s295 + $0x108] sm:$0xff]
        %v330 = vld [vmem:[%s295 + $0x110] sm:$0xff]
        %v331 = vld [vmem:[%s295 + $0x118] sm:$0xff]
        %v332 = vld [vmem:[%s295 + $0x120] sm:$0xff]
        %v333 = vld [vmem:[%s295 + $0x128] sm:$0xff]
        %v334 = vld [vmem:[%s295 + $0x130] sm:$0xff]
        %v335 = vld [vmem:[%s295 + $0x138] sm:$0xff]
        %v336 = vld [vmem:[%s295 + $0x140] sm:$0xff]
        %v337 = vld [vmem:[%s295 + $0x148] sm:$0xff]
        %v338 = vld [vmem:[%s295 + $0x150] sm:$0xff]
        %v339 = vld [vmem:[%s295 + $0x158] sm:$0xff]
        %v340 = vld [vmem:[%s295 + $0x160] sm:$0xff]
        %v341 = vld [vmem:[%s295 + $0x168] sm:$0xff]
        %v342 = vld [vmem:[%s295 + $0x170] sm:$0xff]
        %v343 = vld [vmem:[%s295 + $0x178] sm:$0xff]
        %344 = vmatprep.subr.mxu0 0.0
        %345 = vmatpush1.msra.mxu0 %v311
        %346 = vmatprep.subr.mxu0 0.0
        %347 = vmatpush1.msra.mxu0 %v310
        %348 = vmatprep.subr.mxu0 0.0
        %349 = vmatpush1.msra.mxu0 %v309
        %350 = vmatprep.subr.mxu0 0.0
        %351 = vmatpush1.msra.mxu0 %v308
        %352 = vmatprep.subr.mxu0 0.0
        %353 = vmatpush1.msra.mxu0 %v307
        %354 = vmatprep.subr.mxu0 0.0
        %355 = vmatpush1.msra.mxu0 %v306
        %356 = vmatprep.subr.mxu0 0.0
        %357 = vmatpush1.msra.mxu0 %v305
        %358 = vmatprep.subr.mxu0 0.0
        %359 = vmatpush1.msra.mxu0 %v304
        %360 = vmatprep.subr.mxu0 0.0
        %361 = vmatpush1.msra.mxu0 %v303
        %362 = vmatprep.subr.mxu0 0.0
        %363 = vmatpush1.msra.mxu0 %v302
        %364 = vmatprep.subr.mxu0 0.0
        %365 = vmatpush1.msra.mxu0 %v301
        %366 = vmatprep.subr.mxu0 0.0
        %367 = vmatpush1.msra.mxu0 %v300
        %368 = vmatprep.subr.mxu0 0.0
        %369 = vmatpush1.msra.mxu0 %v299
        %370 = vmatprep.subr.mxu0 0.0
        %371 = vmatpush1.msra.mxu0 %v298
        %372 = vmatprep.subr.mxu0 0.0
        %373 = vmatpush1.msra.mxu0 %v297
        %374 = vmatprep.subr.mxu0 0.0
        %375 = vmatpush1.msra.mxu0 %v296
        %376 = vmatprep.subr.mxu0 0.0
        %377 = vmatpush2.msra.mxu0 %v327
        %378 = vmatprep.subr.mxu0 0.0
        %379 = vmatpush2.msra.mxu0 %v326
        %380 = vmatprep.subr.mxu0 0.0
        %381 = vmatpush2.msra.mxu0 %v325
        %382 = vmatprep.subr.mxu0 0.0
        %383 = vmatpush2.msra.mxu0 %v324
        %384 = vmatprep.subr.mxu0 0.0
        %385 = vmatpush2.msra.mxu0 %v323
        %386 = vmatprep.subr.mxu0 0.0
        %387 = vmatpush2.msra.mxu0 %v322
        %388 = vmatprep.subr.mxu0 0.0
        %389 = vmatpush2.msra.mxu0 %v321
        %390 = vmatprep.subr.mxu0 0.0
        %391 = vmatpush2.msra.mxu0 %v320
        %392 = vmatprep.subr.mxu0 0.0
        %393 = vmatpush2.msra.mxu0 %v319
        %394 = vmatprep.subr.mxu0 0.0
        %395 = vmatpush2.msra.mxu0 %v318
        %396 = vmatprep.subr.mxu0 0.0
        %397 = vmatpush2.msra.mxu0 %v317
        %398 = vmatprep.subr.mxu0 0.0
        %399 = vmatpush2.msra.mxu0 %v316
        %400 = vmatprep.subr.mxu0 0.0
        %401 = vmatpush2.msra.mxu0 %v315
        %402 = vmatprep.subr.mxu0 0.0
        %403 = vmatpush2.msra.mxu0 %v314
        %404 = vmatprep.subr.mxu0 0.0
        %405 = vmatpush2.msra.mxu0 %v313
        %406 = vmatprep.subr.mxu0 0.0
        %407 = vmatpush2.msra.mxu0 %v312
        %408 = vmatprep.mubr.f32.mxu0 %v209
        %409 = vmatmul.mubr.f32.gmra.mxu0 %v189
        %v410 = vpop.f32.mrf.mxu0
        %v411 = vadd.f32 0.0, %v410
        %v412 = vpop.f32.mrf.mxu0
        %413 = vmatprep.mubr.f32.mxu0 %v210
        %414 = vmatmul.mubr.f32.gmra.mxu0 %v190
        %v415 = vpop.f32.mrf.mxu0
        %v416 = vadd.f32 0.0, %v415
        %v417 = vpop.f32.mrf.mxu0
        %418 = vmatprep.mubr.f32.mxu0 %v211
        %419 = vmatmul.mubr.f32.gmra.mxu0 %v191
        %v420 = vpop.f32.mrf.mxu0
        %v421 = vadd.f32 0.0, %v420
        %v422 = vpop.f32.mrf.mxu0
        %423 = vmatprep.mubr.f32.mxu0 %v212
        %424 = vmatmul.mubr.f32.gmra.mxu0 %v192
        %v425 = vpop.f32.mrf.mxu0
        %v426 = vadd.f32 0.0, %v425
        %v427 = vpop.f32.mrf.mxu0
        %428 = vmatprep.mubr.f32.mxu0 %v213
        %429 = vmatmul.mubr.f32.gmra.mxu0 %v193
        %v430 = vpop.f32.mrf.mxu0
        %v431 = vadd.f32 0.0, %v430
        %v432 = vpop.f32.mrf.mxu0
        %433 = vmatprep.mubr.f32.mxu0 %v214
        %434 = vmatmul.mubr.f32.gmra.mxu0 %v194
        %v435 = vpop.f32.mrf.mxu0
        %v436 = vadd.f32 0.0, %v435
        %v437 = vpop.f32.mrf.mxu0
        %438 = vmatprep.mubr.f32.mxu0 %v215
        %439 = vmatmul.mubr.f32.gmra.mxu0 %v195
        %v440 = vpop.f32.mrf.mxu0
        %v441 = vadd.f32 0.0, %v440
        %v442 = vpop.f32.mrf.mxu0
        %443 = vmatprep.mubr.f32.mxu0 %v216
        %444 = vmatmul.mubr.f32.gmra.mxu0 %v196
        %v445 = vpop.f32.mrf.mxu0
        %v446 = vadd.f32 0.0, %v445
        %v447 = vpop.f32.mrf.mxu0
        %448 = vmatprep.mubr.f32.mxu0 %v217
        %449 = vmatmul.mubr.f32.gmra.mxu0 %v197
        %v450 = vpop.f32.mrf.mxu0
        %v451 = vadd.f32 0.0, %v450
        %v452 = vpop.f32.mrf.mxu0
        %453 = vmatprep.mubr.f32.mxu0 %v218
        %454 = vmatmul.mubr.f32.gmra.mxu0 %v198
        %v455 = vpop.f32.mrf.mxu0
        %v456 = vadd.f32 0.0, %v455
        %v457 = vpop.f32.mrf.mxu0
        %458 = vmatprep.mubr.f32.mxu0 %v219
        %459 = vmatmul.mubr.f32.gmra.mxu0 %v199
        %v460 = vpop.f32.mrf.mxu0
        %v461 = vadd.f32 0.0, %v460
        %v462 = vpop.f32.mrf.mxu0
        %463 = vmatprep.mubr.f32.mxu0 %v220
        %464 = vmatmul.mubr.f32.gmra.mxu0 %v200
        %v465 = vpop.f32.mrf.mxu0
        %v466 = vadd.f32 0.0, %v465
        %v467 = vpop.f32.mrf.mxu0
        %468 = vmatprep.mubr.f32.mxu0 %v221
        %469 = vmatmul.mubr.f32.gmra.mxu0 %v201
        %v470 = vpop.f32.mrf.mxu0
        %v471 = vadd.f32 0.0, %v470
        %v472 = vpop.f32.mrf.mxu0
        %473 = vmatprep.mubr.f32.mxu0 %v222
        %474 = vmatmul.mubr.f32.gmra.mxu0 %v202
        %v475 = vpop.f32.mrf.mxu0
        %v476 = vadd.f32 0.0, %v475
        %v477 = vpop.f32.mrf.mxu0
        %478 = vmatprep.mubr.f32.mxu0 %v223
        %479 = vmatmul.mubr.f32.gmra.mxu0 %v203
        %v480 = vpop.f32.mrf.mxu0
        %v481 = vadd.f32 0.0, %v480
        %v482 = vpop.f32.mrf.mxu0
        %483 = vmatprep.mubr.f32.mxu0 %v224
        %484 = vmatmul.mubr.f32.gmra.mxu0 %v204
        %v485 = vpop.f32.mrf.mxu0
        %v486 = vadd.f32 0.0, %v485
        %v487 = vpop.f32.mrf.mxu0
        %488 = vdwg.mxu0
        %489 = vmatprep.subr.mxu0 0.0
        %490 = vmatpush1.msra.mxu0 %v343
        %491 = vmatprep.subr.mxu0 0.0
        %492 = vmatpush1.msra.mxu0 %v342
        %493 = vmatprep.subr.mxu0 0.0
        %494 = vmatpush1.msra.mxu0 %v341
        %495 = vmatprep.subr.mxu0 0.0
        %496 = vmatpush1.msra.mxu0 %v340
        %497 = vmatprep.subr.mxu0 0.0
        %498 = vmatpush1.msra.mxu0 %v339
        %499 = vmatprep.subr.mxu0 0.0
        %500 = vmatpush1.msra.mxu0 %v338
        %501 = vmatprep.subr.mxu0 0.0
        %502 = vmatpush1.msra.mxu0 %v337
        %503 = vmatprep.subr.mxu0 0.0
        %504 = vmatpush1.msra.mxu0 %v336
        %505 = vmatprep.subr.mxu0 0.0
        %506 = vmatpush1.msra.mxu0 %v335
        %507 = vmatprep.subr.mxu0 0.0
        %508 = vmatpush1.msra.mxu0 %v334
        %509 = vmatprep.subr.mxu0 0.0
        %510 = vmatpush1.msra.mxu0 %v333
        %511 = vmatprep.subr.mxu0 0.0
        %512 = vmatpush1.msra.mxu0 %v332
        %513 = vmatprep.subr.mxu0 0.0
        %514 = vmatpush1.msra.mxu0 %v331
        %515 = vmatprep.subr.mxu0 0.0
        %516 = vmatpush1.msra.mxu0 %v330
        %517 = vmatprep.subr.mxu0 0.0
        %518 = vmatpush1.msra.mxu0 %v329
        %519 = vmatprep.subr.mxu0 0.0
        %520 = vmatpush1.msra.mxu0 %v328
        %521 = vmatprep.subr.mxu0 0.0
        %522 = vmatpush2.msra.mxu0 0.0
        %523 = vmatprep.subr.mxu0 0.0
        %524 = vmatpush2.msra.mxu0 0.0
        %525 = vmatprep.subr.mxu0 0.0
        %526 = vmatpush2.msra.mxu0 0.0
        %527 = vmatprep.subr.mxu0 0.0
        %528 = vmatpush2.msra.mxu0 0.0
        %529 = vmatprep.subr.mxu0 0.0
        %530 = vmatpush2.msra.mxu0 0.0
        %531 = vmatprep.subr.mxu0 0.0
        %532 = vmatpush2.msra.mxu0 0.0
        %533 = vmatprep.subr.mxu0 0.0
        %534 = vmatpush2.msra.mxu0 0.0
        %535 = vmatprep.subr.mxu0 0.0
        %536 = vmatpush2.msra.mxu0 0.0
        %537 = vmatprep.subr.mxu0 0.0
        %538 = vmatpush2.msra.mxu0 0.0
        %539 = vmatprep.subr.mxu0 0.0
        %540 = vmatpush2.msra.mxu0 0.0
        %541 = vmatprep.subr.mxu0 0.0
        %542 = vmatpush2.msra.mxu0 0.0
        %543 = vmatprep.subr.mxu0 0.0
        %544 = vmatpush2.msra.mxu0 0.0
        %545 = vmatprep.subr.mxu0 0.0
        %546 = vmatpush2.msra.mxu0 0.0
        %547 = vmatprep.subr.mxu0 0.0
        %548 = vmatpush2.msra.mxu0 0.0
        %549 = vmatprep.subr.mxu0 0.0
        %550 = vmatpush2.msra.mxu0 0.0
        %551 = vmatprep.subr.mxu0 0.0
        %552 = vmatpush2.msra.mxu0 0.0
        %553 = vmatprep.mubr.f32.mxu0 0.0
        %554 = vmatmul.mubr.f32.gmra.mxu0 %v229
        %v555 = vpop.f32.mrf.mxu0
        %v556 = vadd.f32 %v411, %v555
        %v557 = vpop.f32.mrf.mxu0
        %558 = vmatprep.mubr.f32.mxu0 0.0
        %559 = vmatmul.mubr.f32.gmra.mxu0 %v230
        %v560 = vpop.f32.mrf.mxu0
        %v561 = vadd.f32 %v416, %v560
        %v562 = vpop.f32.mrf.mxu0
        %563 = vmatprep.mubr.f32.mxu0 0.0
        %564 = vmatmul.mubr.f32.gmra.mxu0 %v231
        %v565 = vpop.f32.mrf.mxu0
        %v566 = vadd.f32 %v421, %v565
        %v567 = vpop.f32.mrf.mxu0
        %568 = vmatprep.mubr.f32.mxu0 0.0
        %569 = vmatmul.mubr.f32.gmra.mxu0 %v232
        %v570 = vpop.f32.mrf.mxu0
        %v571 = vadd.f32 %v426, %v570
        %v572 = vpop.f32.mrf.mxu0
        %573 = vmatprep.mubr.f32.mxu0 0.0
        %574 = vmatmul.mubr.f32.gmra.mxu0 %v233
        %v575 = vpop.f32.mrf.mxu0
        %v576 = vadd.f32 %v431, %v575
        %v577 = vpop.f32.mrf.mxu0
        %578 = vmatprep.mubr.f32.mxu0 0.0
        %579 = vmatmul.mubr.f32.gmra.mxu0 %v234
        %v580 = vpop.f32.mrf.mxu0
        %v581 = vadd.f32 %v436, %v580
        %v582 = vpop.f32.mrf.mxu0
        %583 = vmatprep.mubr.f32.mxu0 0.0
        %584 = vmatmul.mubr.f32.gmra.mxu0 %v235
        %v585 = vpop.f32.mrf.mxu0
        %v586 = vadd.f32 %v441, %v585
        %v587 = vpop.f32.mrf.mxu0
        %588 = vmatprep.mubr.f32.mxu0 0.0
        %589 = vmatmul.mubr.f32.gmra.mxu0 %v236
        %v590 = vpop.f32.mrf.mxu0
        %v591 = vadd.f32 %v446, %v590
        %v592 = vpop.f32.mrf.mxu0
        %593 = vmatprep.mubr.f32.mxu0 0.0
        %594 = vmatmul.mubr.f32.gmra.mxu0 %v237
        %v595 = vpop.f32.mrf.mxu0
        %v596 = vadd.f32 %v451, %v595
        %v597 = vpop.f32.mrf.mxu0
        %598 = vmatprep.mubr.f32.mxu0 0.0
        %599 = vmatmul.mubr.f32.gmra.mxu0 %v238
        %v600 = vpop.f32.mrf.mxu0
        %v601 = vadd.f32 %v456, %v600
        %v602 = vpop.f32.mrf.mxu0
        %603 = vmatprep.mubr.f32.mxu0 0.0
        %604 = vmatmul.mubr.f32.gmra.mxu0 %v239
        %v605 = vpop.f32.mrf.mxu0
        %v606 = vadd.f32 %v461, %v605
        %v607 = vpop.f32.mrf.mxu0
        %608 = vmatprep.mubr.f32.mxu0 0.0
        %609 = vmatmul.mubr.f32.gmra.mxu0 %v240
        %v610 = vpop.f32.mrf.mxu0
        %v611 = vadd.f32 %v466, %v610
        %v612 = vpop.f32.mrf.mxu0
        %613 = vmatprep.mubr.f32.mxu0 0.0
        %614 = vmatmul.mubr.f32.gmra.mxu0 %v241
        %v615 = vpop.f32.mrf.mxu0
        %v616 = vadd.f32 %v471, %v615
        %v617 = vpop.f32.mrf.mxu0
        %618 = vmatprep.mubr.f32.mxu0 0.0
        %619 = vmatmul.mubr.f32.gmra.mxu0 %v242
        %v620 = vpop.f32.mrf.mxu0
        %v621 = vadd.f32 %v476, %v620
        %v622 = vpop.f32.mrf.mxu0
        %623 = vmatprep.mubr.f32.mxu0 0.0
        %624 = vmatmul.mubr.f32.gmra.mxu0 %v243
        %v625 = vpop.f32.mrf.mxu0
        %v626 = vadd.f32 %v481, %v625
        %v627 = vpop.f32.mrf.mxu0
        %628 = vmatprep.mubr.f32.mxu0 0.0
        %629 = vmatmul.mubr.f32.gmra.mxu0 %v244
        %v630 = vpop.f32.mrf.mxu0
        %v631 = vadd.f32 %v486, %v630
        %v632 = vpop.f32.mrf.mxu0
        %633 = vdwg.mxu0
        %634 = vmatprep.subr.mxu0 0.0
        %635 = vmatpush1.msra.mxu0 %v262
        %636 = vmatprep.subr.mxu0 0.0
        %637 = vmatpush1.msra.mxu0 %v261
        %638 = vmatprep.subr.mxu0 0.0
        %639 = vmatpush1.msra.mxu0 %v260
        %640 = vmatprep.subr.mxu0 0.0
        %641 = vmatpush1.msra.mxu0 %v259
        %642 = vmatprep.subr.mxu0 0.0
        %643 = vmatpush1.msra.mxu0 %v258
        %644 = vmatprep.subr.mxu0 0.0
        %645 = vmatpush1.msra.mxu0 %v257
        %646 = vmatprep.subr.mxu0 0.0
        %647 = vmatpush1.msra.mxu0 %v256
        %648 = vmatprep.subr.mxu0 0.0
        %649 = vmatpush1.msra.mxu0 %v255
        %650 = vmatprep.subr.mxu0 0.0
        %651 = vmatpush1.msra.mxu0 %v254
        %652 = vmatprep.subr.mxu0 0.0
        %653 = vmatpush1.msra.mxu0 %v253
        %654 = vmatprep.subr.mxu0 0.0
        %655 = vmatpush1.msra.mxu0 %v252
        %656 = vmatprep.subr.mxu0 0.0
        %657 = vmatpush1.msra.mxu0 %v251
        %658 = vmatprep.subr.mxu0 0.0
        %659 = vmatpush1.msra.mxu0 %v250
        %660 = vmatprep.subr.mxu0 0.0
        %661 = vmatpush1.msra.mxu0 %v249
        %662 = vmatprep.subr.mxu0 0.0
        %663 = vmatpush1.msra.mxu0 %v248
        %664 = vmatprep.subr.mxu0 0.0
        %665 = vmatpush1.msra.mxu0 %v247
        %666 = vmatprep.subr.mxu0 0.0
        %667 = vmatpush2.msra.mxu0 %v278
        %668 = vmatprep.subr.mxu0 0.0
        %669 = vmatpush2.msra.mxu0 %v277
        %670 = vmatprep.subr.mxu0 0.0
        %671 = vmatpush2.msra.mxu0 %v276
        %672 = vmatprep.subr.mxu0 0.0
        %673 = vmatpush2.msra.mxu0 %v275
        %674 = vmatprep.subr.mxu0 0.0
        %675 = vmatpush2.msra.mxu0 %v274
        %676 = vmatprep.subr.mxu0 0.0
        %677 = vmatpush2.msra.mxu0 %v273
        %678 = vmatprep.subr.mxu0 0.0
        %679 = vmatpush2.msra.mxu0 %v272
        %680 = vmatprep.subr.mxu0 0.0
        %681 = vmatpush2.msra.mxu0 %v271
        %682 = vmatprep.subr.mxu0 0.0
        %683 = vmatpush2.msra.mxu0 %v270
        %684 = vmatprep.subr.mxu0 0.0
        %685 = vmatpush2.msra.mxu0 %v269
        %686 = vmatprep.subr.mxu0 0.0
        %687 = vmatpush2.msra.mxu0 %v268
        %688 = vmatprep.subr.mxu0 0.0
        %689 = vmatpush2.msra.mxu0 %v267
        %690 = vmatprep.subr.mxu0 0.0
        %691 = vmatpush2.msra.mxu0 %v266
        %692 = vmatprep.subr.mxu0 0.0
        %693 = vmatpush2.msra.mxu0 %v265
        %694 = vmatprep.subr.mxu0 0.0
        %695 = vmatpush2.msra.mxu0 %v264
        %696 = vmatprep.subr.mxu0 0.0
        %697 = vmatpush2.msra.mxu0 %v263
        %698 = vmatprep.mubr.f32.mxu0 %v207
        %699 = vmatmul.mubr.f32.gmra.mxu0 %v187
        %v700 = vpop.f32.mrf.mxu0
        %v701 = vadd.f32 %v556, %v700
        %v702 = vpop.f32.mrf.mxu0
        %703 = vmatprep.mubr.f32.mxu0 %v208
        %704 = vmatmul.mubr.f32.gmra.mxu0 %v188
        %v705 = vpop.f32.mrf.mxu0
        %v706 = vadd.f32 %v561, %v705
        %v707 = vpop.f32.mrf.mxu0
        %708 = vmatprep.mubr.f32.mxu0 %v209
        %709 = vmatmul.mubr.f32.gmra.mxu0 %v189
        %v710 = vpop.f32.mrf.mxu0
        %v711 = vadd.f32 %v566, %v710
        %v712 = vpop.f32.mrf.mxu0
        %713 = vmatprep.mubr.f32.mxu0 %v210
        %714 = vmatmul.mubr.f32.gmra.mxu0 %v190
        %v715 = vpop.f32.mrf.mxu0
        %v716 = vadd.f32 %v571, %v715
        %v717 = vpop.f32.mrf.mxu0
        %718 = vmatprep.mubr.f32.mxu0 %v211
        %719 = vmatmul.mubr.f32.gmra.mxu0 %v191
        %v720 = vpop.f32.mrf.mxu0
        %v721 = vadd.f32 %v576, %v720
        %v722 = vpop.f32.mrf.mxu0
        %723 = vmatprep.mubr.f32.mxu0 %v212
        %724 = vmatmul.mubr.f32.gmra.mxu0 %v192
        %v725 = vpop.f32.mrf.mxu0
        %v726 = vadd.f32 %v581, %v725
        %v727 = vpop.f32.mrf.mxu0
        %728 = vmatprep.mubr.f32.mxu0 %v213
        %729 = vmatmul.mubr.f32.gmra.mxu0 %v193
        %v730 = vpop.f32.mrf.mxu0
        %v731 = vadd.f32 %v586, %v730
        %v732 = vpop.f32.mrf.mxu0
        %733 = vmatprep.mubr.f32.mxu0 %v214
        %734 = vmatmul.mubr.f32.gmra.mxu0 %v194
        %v735 = vpop.f32.mrf.mxu0
        %v736 = vadd.f32 %v591, %v735
        %v737 = vpop.f32.mrf.mxu0
        %738 = vmatprep.mubr.f32.mxu0 %v215
        %739 = vmatmul.mubr.f32.gmra.mxu0 %v195
        %v740 = vpop.f32.mrf.mxu0
        %v741 = vadd.f32 %v596, %v740
        %v742 = vpop.f32.mrf.mxu0
        %743 = vmatprep.mubr.f32.mxu0 %v216
        %744 = vmatmul.mubr.f32.gmra.mxu0 %v196
        %v745 = vpop.f32.mrf.mxu0
        %v746 = vadd.f32 %v601, %v745
        %v747 = vpop.f32.mrf.mxu0
        %748 = vmatprep.mubr.f32.mxu0 %v217
        %749 = vmatmul.mubr.f32.gmra.mxu0 %v197
        %v750 = vpop.f32.mrf.mxu0
        %v751 = vadd.f32 %v606, %v750
        %v752 = vpop.f32.mrf.mxu0
        %753 = vmatprep.mubr.f32.mxu0 %v218
        %754 = vmatmul.mubr.f32.gmra.mxu0 %v198
        %v755 = vpop.f32.mrf.mxu0
        %v756 = vadd.f32 %v611, %v755
        %v757 = vpop.f32.mrf.mxu0
        %758 = vmatprep.mubr.f32.mxu0 %v219
        %759 = vmatmul.mubr.f32.gmra.mxu0 %v199
        %v760 = vpop.f32.mrf.mxu0
        %v761 = vadd.f32 %v616, %v760
        %v762 = vpop.f32.mrf.mxu0
        %763 = vmatprep.mubr.f32.mxu0 %v220
        %764 = vmatmul.mubr.f32.gmra.mxu0 %v200
        %v765 = vpop.f32.mrf.mxu0
        %v766 = vadd.f32 %v621, %v765
        %v767 = vpop.f32.mrf.mxu0
        %768 = vmatprep.mubr.f32.mxu0 %v221
        %769 = vmatmul.mubr.f32.gmra.mxu0 %v201
        %v770 = vpop.f32.mrf.mxu0
        %v771 = vadd.f32 %v626, %v770
        %v772 = vpop.f32.mrf.mxu0
        %773 = vmatprep.mubr.f32.mxu0 %v222
        %774 = vmatmul.mubr.f32.gmra.mxu0 %v202
        %v775 = vpop.f32.mrf.mxu0
        %v776 = vadd.f32 %v631, %v775
        %v777 = vpop.f32.mrf.mxu0
        %778 = vdwg.mxu0
        %779 = vmatprep.subr.mxu0 0.0
        %780 = vmatpush1.msra.mxu0 %v294
        %781 = vmatprep.subr.mxu0 0.0
        %782 = vmatpush1.msra.mxu0 %v293
        %783 = vmatprep.subr.mxu0 0.0
        %784 = vmatpush1.msra.mxu0 %v292
        %785 = vmatprep.subr.mxu0 0.0
        %786 = vmatpush1.msra.mxu0 %v291
        %787 = vmatprep.subr.mxu0 0.0
        %788 = vmatpush1.msra.mxu0 %v290
        %789 = vmatprep.subr.mxu0 0.0
        %790 = vmatpush1.msra.mxu0 %v289
        %791 = vmatprep.subr.mxu0 0.0
        %792 = vmatpush1.msra.mxu0 %v288
        %793 = vmatprep.subr.mxu0 0.0
        %794 = vmatpush1.msra.mxu0 %v287
        %795 = vmatprep.subr.mxu0 0.0
        %796 = vmatpush1.msra.mxu0 %v286
        %797 = vmatprep.subr.mxu0 0.0
        %798 = vmatpush1.msra.mxu0 %v285
        %799 = vmatprep.subr.mxu0 0.0
        %800 = vmatpush1.msra.mxu0 %v284
        %801 = vmatprep.subr.mxu0 0.0
        %802 = vmatpush1.msra.mxu0 %v283
        %803 = vmatprep.subr.mxu0 0.0
        %804 = vmatpush1.msra.mxu0 %v282
        %805 = vmatprep.subr.mxu0 0.0
        %806 = vmatpush1.msra.mxu0 %v281
        %807 = vmatprep.subr.mxu0 0.0
        %808 = vmatpush1.msra.mxu0 %v280
        %809 = vmatprep.subr.mxu0 0.0
        %810 = vmatpush1.msra.mxu0 %v279
        %811 = vmatprep.subr.mxu0 0.0
        %812 = vmatpush2.msra.mxu0 0.0
        %813 = vmatprep.subr.mxu0 0.0
        %814 = vmatpush2.msra.mxu0 0.0
        %815 = vmatprep.subr.mxu0 0.0
        %816 = vmatpush2.msra.mxu0 0.0
        %817 = vmatprep.subr.mxu0 0.0
        %818 = vmatpush2.msra.mxu0 0.0
        %819 = vmatprep.subr.mxu0 0.0
        %820 = vmatpush2.msra.mxu0 0.0
        %821 = vmatprep.subr.mxu0 0.0
        %822 = vmatpush2.msra.mxu0 0.0
        %823 = vmatprep.subr.mxu0 0.0
        %824 = vmatpush2.msra.mxu0 0.0
        %825 = vmatprep.subr.mxu0 0.0
        %826 = vmatpush2.msra.mxu0 0.0
        %827 = vmatprep.subr.mxu0 0.0
        %828 = vmatpush2.msra.mxu0 0.0
        %829 = vmatprep.subr.mxu0 0.0
        %830 = vmatpush2.msra.mxu0 0.0
        %831 = vmatprep.subr.mxu0 0.0
        %832 = vmatpush2.msra.mxu0 0.0
        %833 = vmatprep.subr.mxu0 0.0
        %834 = vmatpush2.msra.mxu0 0.0
        %835 = vmatprep.subr.mxu0 0.0
        %836 = vmatpush2.msra.mxu0 0.0
        %837 = vmatprep.subr.mxu0 0.0
        %838 = vmatpush2.msra.mxu0 0.0
        %839 = vmatprep.subr.mxu0 0.0
        %840 = vmatpush2.msra.mxu0 0.0
        %841 = vmatprep.subr.mxu0 0.0
        %842 = vmatpush2.msra.mxu0 0.0
        %843 = vmatprep.mubr.f32.mxu0 0.0
        %844 = vmatmul.mubr.f32.gmra.mxu0 %v227
        %v845 = vpop.f32.mrf.mxu0
        %v846 = vadd.f32 %v701, %v845
        %v847 = vpop.f32.mrf.mxu0
        %848 = vmatprep.mubr.f32.mxu0 0.0
        %849 = vmatmul.mubr.f32.gmra.mxu0 %v228
        %v850 = vpop.f32.mrf.mxu0
        %v851 = vadd.f32 %v706, %v850
        %v852 = vpop.f32.mrf.mxu0
        %853 = vmatprep.mubr.f32.mxu0 0.0
        %854 = vmatmul.mubr.f32.gmra.mxu0 %v229
        %v855 = vpop.f32.mrf.mxu0
        %v856 = vadd.f32 %v711, %v855
        %v857 = vpop.f32.mrf.mxu0
        %858 = vmatprep.mubr.f32.mxu0 0.0
        %859 = vmatmul.mubr.f32.gmra.mxu0 %v230
        %v860 = vpop.f32.mrf.mxu0
        %v861 = vadd.f32 %v716, %v860
        %v862 = vpop.f32.mrf.mxu0
        %863 = vmatprep.mubr.f32.mxu0 0.0
        %864 = vmatmul.mubr.f32.gmra.mxu0 %v231
        %v865 = vpop.f32.mrf.mxu0
        %v866 = vadd.f32 %v721, %v865
        %v867 = vpop.f32.mrf.mxu0
        %868 = vmatprep.mubr.f32.mxu0 0.0
        %869 = vmatmul.mubr.f32.gmra.mxu0 %v232
        %v870 = vpop.f32.mrf.mxu0
        %v871 = vadd.f32 %v726, %v870
        %v872 = vpop.f32.mrf.mxu0
        %873 = vmatprep.mubr.f32.mxu0 0.0
        %874 = vmatmul.mubr.f32.gmra.mxu0 %v233
        %v875 = vpop.f32.mrf.mxu0
        %v876 = vadd.f32 %v731, %v875
        %v877 = vpop.f32.mrf.mxu0
        %878 = vmatprep.mubr.f32.mxu0 0.0
        %879 = vmatmul.mubr.f32.gmra.mxu0 %v234
        %v880 = vpop.f32.mrf.mxu0
        %v881 = vadd.f32 %v736, %v880
        %v882 = vpop.f32.mrf.mxu0
        %883 = vmatprep.mubr.f32.mxu0 0.0
        %884 = vmatmul.mubr.f32.gmra.mxu0 %v235
        %v885 = vpop.f32.mrf.mxu0
        %v886 = vadd.f32 %v741, %v885
        %v887 = vpop.f32.mrf.mxu0
        %888 = vmatprep.mubr.f32.mxu0 0.0
        %889 = vmatmul.mubr.f32.gmra.mxu0 %v236
        %v890 = vpop.f32.mrf.mxu0
        %v891 = vadd.f32 %v746, %v890
        %v892 = vpop.f32.mrf.mxu0
        %893 = vmatprep.mubr.f32.mxu0 0.0
        %894 = vmatmul.mubr.f32.gmra.mxu0 %v237
        %v895 = vpop.f32.mrf.mxu0
        %v896 = vadd.f32 %v751, %v895
        %v897 = vpop.f32.mrf.mxu0
        %898 = vmatprep.mubr.f32.mxu0 0.0
        %899 = vmatmul.mubr.f32.gmra.mxu0 %v238
        %v900 = vpop.f32.mrf.mxu0
        %v901 = vadd.f32 %v756, %v900
        %v902 = vpop.f32.mrf.mxu0
        %903 = vmatprep.mubr.f32.mxu0 0.0
        %904 = vmatmul.mubr.f32.gmra.mxu0 %v239
        %v905 = vpop.f32.mrf.mxu0
        %v906 = vadd.f32 %v761, %v905
        %v907 = vpop.f32.mrf.mxu0
        %908 = vmatprep.mubr.f32.mxu0 0.0
        %909 = vmatmul.mubr.f32.gmra.mxu0 %v240
        %v910 = vpop.f32.mrf.mxu0
        %v911 = vadd.f32 %v766, %v910
        %v912 = vpop.f32.mrf.mxu0
        %913 = vmatprep.mubr.f32.mxu0 0.0
        %914 = vmatmul.mubr.f32.gmra.mxu0 %v241
        %v915 = vpop.f32.mrf.mxu0
        %v916 = vadd.f32 %v771, %v915
        %v917 = vpop.f32.mrf.mxu0
        %918 = vmatprep.mubr.f32.mxu0 0.0
        %919 = vmatmul.mubr.f32.gmra.mxu0 %v242
        %v920 = vpop.f32.mrf.mxu0
        %v921 = vadd.f32 %v776, %v920
        %v922 = vpop.f32.mrf.mxu0
        %923 = vdwg.mxu0
        %s924 = scalar_lea.vmem %s1, 768
        %v925 = vld [vmem:[%s924] sm:$0xff]
        %v926 = vld [vmem:[%s924 + $0x8] sm:$0xff]
        %v927 = vld [vmem:[%s924 + $0x10] sm:$0xff]
        %v928 = vld [vmem:[%s924 + $0x18] sm:$0xff]
        %v929 = vld [vmem:[%s924 + $0x20] sm:$0xff]
        %v930 = vld [vmem:[%s924 + $0x28] sm:$0xff]
        %v931 = vld [vmem:[%s924 + $0x30] sm:$0xff]
        %v932 = vld [vmem:[%s924 + $0x38] sm:$0xff]
        %v933 = vld [vmem:[%s924 + $0x40] sm:$0xff]
        %v934 = vld [vmem:[%s924 + $0x48] sm:$0xff]
        %v935 = vld [vmem:[%s924 + $0x50] sm:$0xff]
        %v936 = vld [vmem:[%s924 + $0x58] sm:$0xff]
        %v937 = vld [vmem:[%s924 + $0x60] sm:$0xff]
        %v938 = vld [vmem:[%s924 + $0x68] sm:$0xff]
        %v939 = vld [vmem:[%s924 + $0x70] sm:$0xff]
        %v940 = vld [vmem:[%s924 + $0x78] sm:$0xff]
        %v941 = vld [vmem:[%s924 + $0x80] sm:$0xff]
        %v942 = vld [vmem:[%s924 + $0x88] sm:$0xff]
        %v943 = vld [vmem:[%s924 + $0x90] sm:$0xff]
        %v944 = vld [vmem:[%s924 + $0x98] sm:$0xff]
        %v945 = vld [vmem:[%s924 + $0xa0] sm:$0xff]
        %v946 = vld [vmem:[%s924 + $0xa8] sm:$0xff]
        %v947 = vld [vmem:[%s924 + $0xb0] sm:$0xff]
        %v948 = vld [vmem:[%s924 + $0xb8] sm:$0xff]
        %v949 = vld [vmem:[%s924 + $0xc0] sm:$0xff]
        %v950 = vld [vmem:[%s924 + $0xc8] sm:$0xff]
        %v951 = vld [vmem:[%s924 + $0xd0] sm:$0xff]
        %v952 = vld [vmem:[%s924 + $0xd8] sm:$0xff]
        %v953 = vld [vmem:[%s924 + $0xe0] sm:$0xff]
        %v954 = vld [vmem:[%s924 + $0xe8] sm:$0xff]
        %v955 = vld [vmem:[%s924 + $0xf0] sm:$0xff]
        %v956 = vld [vmem:[%s924 + $0xf8] sm:$0xff]
        %v957 = vld [vmem:[%s924 + $0x100] sm:$0xff]
        %v958 = vld [vmem:[%s924 + $0x108] sm:$0xff]
        %v959 = vld [vmem:[%s924 + $0x110] sm:$0xff]
        %v960 = vld [vmem:[%s924 + $0x118] sm:$0xff]
        %v961 = vld [vmem:[%s924 + $0x120] sm:$0xff]
        %v962 = vld [vmem:[%s924 + $0x128] sm:$0xff]
        %v963 = vld [vmem:[%s924 + $0x130] sm:$0xff]
        %v964 = vld [vmem:[%s924 + $0x138] sm:$0xff]
        %v965 = vld [vmem:[%s924 + $0x140] sm:$0xff]
        %v966 = vld [vmem:[%s924 + $0x148] sm:$0xff]
        %v967 = vld [vmem:[%s924 + $0x150] sm:$0xff]
        %v968 = vld [vmem:[%s924 + $0x158] sm:$0xff]
        %v969 = vld [vmem:[%s924 + $0x160] sm:$0xff]
        %v970 = vld [vmem:[%s924 + $0x168] sm:$0xff]
        %v971 = vld [vmem:[%s924 + $0x170] sm:$0xff]
        %v972 = vld [vmem:[%s924 + $0x178] sm:$0xff]
        %973 = vmatprep.subr.mxu0 0.0
        %974 = vmatpush1.msra.mxu0 %v940
        %975 = vmatprep.subr.mxu0 0.0
        %976 = vmatpush1.msra.mxu0 %v939
        %977 = vmatprep.subr.mxu0 0.0
        %978 = vmatpush1.msra.mxu0 %v938
        %979 = vmatprep.subr.mxu0 0.0
        %980 = vmatpush1.msra.mxu0 %v937
        %981 = vmatprep.subr.mxu0 0.0
        %982 = vmatpush1.msra.mxu0 %v936
        %983 = vmatprep.subr.mxu0 0.0
        %984 = vmatpush1.msra.mxu0 %v935
        %985 = vmatprep.subr.mxu0 0.0
        %986 = vmatpush1.msra.mxu0 %v934
        %987 = vmatprep.subr.mxu0 0.0
        %988 = vmatpush1.msra.mxu0 %v933
        %989 = vmatprep.subr.mxu0 0.0
        %990 = vmatpush1.msra.mxu0 %v932
        %991 = vmatprep.subr.mxu0 0.0
        %992 = vmatpush1.msra.mxu0 %v931
        %993 = vmatprep.subr.mxu0 0.0
        %994 = vmatpush1.msra.mxu0 %v930
        %995 = vmatprep.subr.mxu0 0.0
        %996 = vmatpush1.msra.mxu0 %v929
        %997 = vmatprep.subr.mxu0 0.0
        %998 = vmatpush1.msra.mxu0 %v928
        %999 = vmatprep.subr.mxu0 0.0
        %1000 = vmatpush1.msra.mxu0 %v927
        %1001 = vmatprep.subr.mxu0 0.0
        %1002 = vmatpush1.msra.mxu0 %v926
        %1003 = vmatprep.subr.mxu0 0.0
        %1004 = vmatpush1.msra.mxu0 %v925
        %1005 = vmatprep.subr.mxu0 0.0
        %1006 = vmatpush2.msra.mxu0 %v956
        %1007 = vmatprep.subr.mxu0 0.0
        %1008 = vmatpush2.msra.mxu0 %v955
        %1009 = vmatprep.subr.mxu0 0.0
        %1010 = vmatpush2.msra.mxu0 %v954
        %1011 = vmatprep.subr.mxu0 0.0
        %1012 = vmatpush2.msra.mxu0 %v953
        %1013 = vmatprep.subr.mxu0 0.0
        %1014 = vmatpush2.msra.mxu0 %v952
        %1015 = vmatprep.subr.mxu0 0.0
        %1016 = vmatpush2.msra.mxu0 %v951
        %1017 = vmatprep.subr.mxu0 0.0
        %1018 = vmatpush2.msra.mxu0 %v950
        %1019 = vmatprep.subr.mxu0 0.0
        %1020 = vmatpush2.msra.mxu0 %v949
        %1021 = vmatprep.subr.mxu0 0.0
        %1022 = vmatpush2.msra.mxu0 %v948
        %1023 = vmatprep.subr.mxu0 0.0
        %1024 = vmatpush2.msra.mxu0 %v947
        %1025 = vmatprep.subr.mxu0 0.0
        %1026 = vmatpush2.msra.mxu0 %v946
        %1027 = vmatprep.subr.mxu0 0.0
        %1028 = vmatpush2.msra.mxu0 %v945
        %1029 = vmatprep.subr.mxu0 0.0
        %1030 = vmatpush2.msra.mxu0 %v944
        %1031 = vmatprep.subr.mxu0 0.0
        %1032 = vmatpush2.msra.mxu0 %v943
        %1033 = vmatprep.subr.mxu0 0.0
        %1034 = vmatpush2.msra.mxu0 %v942
        %1035 = vmatprep.subr.mxu0 0.0
        %1036 = vmatpush2.msra.mxu0 %v941
        %1037 = vmatprep.mubr.f32.mxu0 %v211
        %1038 = vmatmul.mubr.f32.gmra.mxu0 %v191
        %v1039 = vpop.f32.mrf.mxu0
        %v1040 = vadd.f32 0.0, %v1039
        %v1041 = vpop.f32.mrf.mxu0
        %1042 = vmatprep.mubr.f32.mxu0 %v212
        %1043 = vmatmul.mubr.f32.gmra.mxu0 %v192
        %v1044 = vpop.f32.mrf.mxu0
        %v1045 = vadd.f32 0.0, %v1044
        %v1046 = vpop.f32.mrf.mxu0
        %1047 = vmatprep.mubr.f32.mxu0 %v213
        %1048 = vmatmul.mubr.f32.gmra.mxu0 %v193
        %v1049 = vpop.f32.mrf.mxu0
        %v1050 = vadd.f32 0.0, %v1049
        %v1051 = vpop.f32.mrf.mxu0
        %1052 = vmatprep.mubr.f32.mxu0 %v214
        %1053 = vmatmul.mubr.f32.gmra.mxu0 %v194
        %v1054 = vpop.f32.mrf.mxu0
        %v1055 = vadd.f32 0.0, %v1054
        %v1056 = vpop.f32.mrf.mxu0
        %1057 = vmatprep.mubr.f32.mxu0 %v215
        %1058 = vmatmul.mubr.f32.gmra.mxu0 %v195
        %v1059 = vpop.f32.mrf.mxu0
        %v1060 = vadd.f32 0.0, %v1059
        %v1061 = vpop.f32.mrf.mxu0
        %1062 = vmatprep.mubr.f32.mxu0 %v216
        %1063 = vmatmul.mubr.f32.gmra.mxu0 %v196
        %v1064 = vpop.f32.mrf.mxu0
        %v1065 = vadd.f32 0.0, %v1064
        %v1066 = vpop.f32.mrf.mxu0
        %1067 = vmatprep.mubr.f32.mxu0 %v217
        %1068 = vmatmul.mubr.f32.gmra.mxu0 %v197
        %v1069 = vpop.f32.mrf.mxu0
        %v1070 = vadd.f32 0.0, %v1069
        %v1071 = vpop.f32.mrf.mxu0
        %1072 = vmatprep.mubr.f32.mxu0 %v218
        %1073 = vmatmul.mubr.f32.gmra.mxu0 %v198
        %v1074 = vpop.f32.mrf.mxu0
        %v1075 = vadd.f32 0.0, %v1074
        %v1076 = vpop.f32.mrf.mxu0
        %1077 = vmatprep.mubr.f32.mxu0 %v219
        %1078 = vmatmul.mubr.f32.gmra.mxu0 %v199
        %v1079 = vpop.f32.mrf.mxu0
        %v1080 = vadd.f32 0.0, %v1079
        %v1081 = vpop.f32.mrf.mxu0
        %1082 = vmatprep.mubr.f32.mxu0 %v220
        %1083 = vmatmul.mubr.f32.gmra.mxu0 %v200
        %v1084 = vpop.f32.mrf.mxu0
        %v1085 = vadd.f32 0.0, %v1084
        %v1086 = vpop.f32.mrf.mxu0
        %1087 = vmatprep.mubr.f32.mxu0 %v221
        %1088 = vmatmul.mubr.f32.gmra.mxu0 %v201
        %v1089 = vpop.f32.mrf.mxu0
        %v1090 = vadd.f32 0.0, %v1089
        %v1091 = vpop.f32.mrf.mxu0
        %1092 = vmatprep.mubr.f32.mxu0 %v222
        %1093 = vmatmul.mubr.f32.gmra.mxu0 %v202
        %v1094 = vpop.f32.mrf.mxu0
        %v1095 = vadd.f32 0.0, %v1094
        %v1096 = vpop.f32.mrf.mxu0
        %1097 = vmatprep.mubr.f32.mxu0 %v223
        %1098 = vmatmul.mubr.f32.gmra.mxu0 %v203
        %v1099 = vpop.f32.mrf.mxu0
        %v1100 = vadd.f32 0.0, %v1099
        %v1101 = vpop.f32.mrf.mxu0
        %1102 = vmatprep.mubr.f32.mxu0 %v224
        %1103 = vmatmul.mubr.f32.gmra.mxu0 %v204
        %v1104 = vpop.f32.mrf.mxu0
        %v1105 = vadd.f32 0.0, %v1104
        %v1106 = vpop.f32.mrf.mxu0
        %1107 = vmatprep.mubr.f32.mxu0 %v225
        %1108 = vmatmul.mubr.f32.gmra.mxu0 %v205
        %v1109 = vpop.f32.mrf.mxu0
        %v1110 = vadd.f32 0.0, %v1109
        %v1111 = vpop.f32.mrf.mxu0
        %1112 = vmatprep.mubr.f32.mxu0 %v226
        %1113 = vmatmul.mubr.f32.gmra.mxu0 %v206
        %v1114 = vpop.f32.mrf.mxu0
        %v1115 = vadd.f32 0.0, %v1114
        %v1116 = vpop.f32.mrf.mxu0
        %1117 = vdwg.mxu0
        %1118 = vmatprep.subr.mxu0 0.0
        %1119 = vmatpush1.msra.mxu0 %v972
        %1120 = vmatprep.subr.mxu0 0.0
        %1121 = vmatpush1.msra.mxu0 %v971
        %1122 = vmatprep.subr.mxu0 0.0
        %1123 = vmatpush1.msra.mxu0 %v970
        %1124 = vmatprep.subr.mxu0 0.0
        %1125 = vmatpush1.msra.mxu0 %v969
        %1126 = vmatprep.subr.mxu0 0.0
        %1127 = vmatpush1.msra.mxu0 %v968
        %1128 = vmatprep.subr.mxu0 0.0
        %1129 = vmatpush1.msra.mxu0 %v967
        %1130 = vmatprep.subr.mxu0 0.0
        %1131 = vmatpush1.msra.mxu0 %v966
        %1132 = vmatprep.subr.mxu0 0.0
        %1133 = vmatpush1.msra.mxu0 %v965
        %1134 = vmatprep.subr.mxu0 0.0
        %1135 = vmatpush1.msra.mxu0 %v964
        %1136 = vmatprep.subr.mxu0 0.0
        %1137 = vmatpush1.msra.mxu0 %v963
        %1138 = vmatprep.subr.mxu0 0.0
        %1139 = vmatpush1.msra.mxu0 %v962
        %1140 = vmatprep.subr.mxu0 0.0
        %1141 = vmatpush1.msra.mxu0 %v961
        %1142 = vmatprep.subr.mxu0 0.0
        %1143 = vmatpush1.msra.mxu0 %v960
        %1144 = vmatprep.subr.mxu0 0.0
        %1145 = vmatpush1.msra.mxu0 %v959
        %1146 = vmatprep.subr.mxu0 0.0
        %1147 = vmatpush1.msra.mxu0 %v958
        %1148 = vmatprep.subr.mxu0 0.0
        %1149 = vmatpush1.msra.mxu0 %v957
        %1150 = vmatprep.subr.mxu0 0.0
        %1151 = vmatpush2.msra.mxu0 0.0
        %1152 = vmatprep.subr.mxu0 0.0
        %1153 = vmatpush2.msra.mxu0 0.0
        %1154 = vmatprep.subr.mxu0 0.0
        %1155 = vmatpush2.msra.mxu0 0.0
        %1156 = vmatprep.subr.mxu0 0.0
        %1157 = vmatpush2.msra.mxu0 0.0
        %1158 = vmatprep.subr.mxu0 0.0
        %1159 = vmatpush2.msra.mxu0 0.0
        %1160 = vmatprep.subr.mxu0 0.0
        %1161 = vmatpush2.msra.mxu0 0.0
        %1162 = vmatprep.subr.mxu0 0.0
        %1163 = vmatpush2.msra.mxu0 0.0
        %1164 = vmatprep.subr.mxu0 0.0
        %1165 = vmatpush2.msra.mxu0 0.0
        %1166 = vmatprep.subr.mxu0 0.0
        %1167 = vmatpush2.msra.mxu0 0.0
        %1168 = vmatprep.subr.mxu0 0.0
        %1169 = vmatpush2.msra.mxu0 0.0
        %1170 = vmatprep.subr.mxu0 0.0
        %1171 = vmatpush2.msra.mxu0 0.0
        %1172 = vmatprep.subr.mxu0 0.0
        %1173 = vmatpush2.msra.mxu0 0.0
        %1174 = vmatprep.subr.mxu0 0.0
        %1175 = vmatpush2.msra.mxu0 0.0
        %1176 = vmatprep.subr.mxu0 0.0
        %1177 = vmatpush2.msra.mxu0 0.0
        %1178 = vmatprep.subr.mxu0 0.0
        %1179 = vmatpush2.msra.mxu0 0.0
        %1180 = vmatprep.subr.mxu0 0.0
        %1181 = vmatpush2.msra.mxu0 0.0
        %1182 = vmatprep.mubr.f32.mxu0 0.0
        %1183 = vmatmul.mubr.f32.gmra.mxu0 %v231
        %v1184 = vpop.f32.mrf.mxu0
        %v1185 = vadd.f32 %v1040, %v1184
        %v1186 = vpop.f32.mrf.mxu0
        %1187 = vmatprep.mubr.f32.mxu0 0.0
        %1188 = vmatmul.mubr.f32.gmra.mxu0 %v232
        %v1189 = vpop.f32.mrf.mxu0
        %v1190 = vadd.f32 %v1045, %v1189
        %v1191 = vpop.f32.mrf.mxu0
        %1192 = vmatprep.mubr.f32.mxu0 0.0
        %1193 = vmatmul.mubr.f32.gmra.mxu0 %v233
        %v1194 = vpop.f32.mrf.mxu0
        %v1195 = vadd.f32 %v1050, %v1194
        %v1196 = vpop.f32.mrf.mxu0
        %1197 = vmatprep.mubr.f32.mxu0 0.0
        %1198 = vmatmul.mubr.f32.gmra.mxu0 %v234
        %v1199 = vpop.f32.mrf.mxu0
        %v1200 = vadd.f32 %v1055, %v1199
        %v1201 = vpop.f32.mrf.mxu0
        %1202 = vmatprep.mubr.f32.mxu0 0.0
        %1203 = vmatmul.mubr.f32.gmra.mxu0 %v235
        %v1204 = vpop.f32.mrf.mxu0
        %v1205 = vadd.f32 %v1060, %v1204
        %v1206 = vpop.f32.mrf.mxu0
        %1207 = vmatprep.mubr.f32.mxu0 0.0
        %1208 = vmatmul.mubr.f32.gmra.mxu0 %v236
        %v1209 = vpop.f32.mrf.mxu0
        %v1210 = vadd.f32 %v1065, %v1209
        %v1211 = vpop.f32.mrf.mxu0
        %1212 = vmatprep.mubr.f32.mxu0 0.0
        %1213 = vmatmul.mubr.f32.gmra.mxu0 %v237
        %v1214 = vpop.f32.mrf.mxu0
        %v1215 = vadd.f32 %v1070, %v1214
        %v1216 = vpop.f32.mrf.mxu0
        %1217 = vmatprep.mubr.f32.mxu0 0.0
        %1218 = vmatmul.mubr.f32.gmra.mxu0 %v238
        %v1219 = vpop.f32.mrf.mxu0
        %v1220 = vadd.f32 %v1075, %v1219
        %v1221 = vpop.f32.mrf.mxu0
        %1222 = vmatprep.mubr.f32.mxu0 0.0
        %1223 = vmatmul.mubr.f32.gmra.mxu0 %v239
        %v1224 = vpop.f32.mrf.mxu0
        %v1225 = vadd.f32 %v1080, %v1224
        %v1226 = vpop.f32.mrf.mxu0
        %1227 = vmatprep.mubr.f32.mxu0 0.0
        %1228 = vmatmul.mubr.f32.gmra.mxu0 %v240
        %v1229 = vpop.f32.mrf.mxu0
        %v1230 = vadd.f32 %v1085, %v1229
        %v1231 = vpop.f32.mrf.mxu0
        %1232 = vmatprep.mubr.f32.mxu0 0.0
        %1233 = vmatmul.mubr.f32.gmra.mxu0 %v241
        %v1234 = vpop.f32.mrf.mxu0
        %v1235 = vadd.f32 %v1090, %v1234
        %v1236 = vpop.f32.mrf.mxu0
        %1237 = vmatprep.mubr.f32.mxu0 0.0
        %1238 = vmatmul.mubr.f32.gmra.mxu0 %v242
        %v1239 = vpop.f32.mrf.mxu0
        %v1240 = vadd.f32 %v1095, %v1239
        %v1241 = vpop.f32.mrf.mxu0
        %1242 = vmatprep.mubr.f32.mxu0 0.0
        %1243 = vmatmul.mubr.f32.gmra.mxu0 %v243
        %v1244 = vpop.f32.mrf.mxu0
        %v1245 = vadd.f32 %v1100, %v1244
        %v1246 = vpop.f32.mrf.mxu0
        %1247 = vmatprep.mubr.f32.mxu0 0.0
        %1248 = vmatmul.mubr.f32.gmra.mxu0 %v244
        %v1249 = vpop.f32.mrf.mxu0
        %v1250 = vadd.f32 %v1105, %v1249
        %v1251 = vpop.f32.mrf.mxu0
        %1252 = vmatprep.mubr.f32.mxu0 0.0
        %1253 = vmatmul.mubr.f32.gmra.mxu0 %v245
        %v1254 = vpop.f32.mrf.mxu0
        %v1255 = vadd.f32 %v1110, %v1254
        %v1256 = vpop.f32.mrf.mxu0
        %1257 = vmatprep.mubr.f32.mxu0 0.0
        %1258 = vmatmul.mubr.f32.gmra.mxu0 %v246
        %v1259 = vpop.f32.mrf.mxu0
        %v1260 = vadd.f32 %v1115, %v1259
        %v1261 = vpop.f32.mrf.mxu0
        %1262 = vdwg.mxu0
        %v1263 = vadd.f32 %v846, %v1185
        %v1264 = vadd.f32 %v851, %v1190
        %v1265 = vadd.f32 %v856, %v1195
        %v1266 = vadd.f32 %v861, %v1200
        %v1267 = vadd.f32 %v866, %v1205
        %v1268 = vadd.f32 %v871, %v1210
        %v1269 = vadd.f32 %v876, %v1215
        %v1270 = vadd.f32 %v881, %v1220
        %v1271 = vadd.f32 %v886, %v1225
        %v1272 = vadd.f32 %v891, %v1230
        %v1273 = vadd.f32 %v896, %v1235
        %v1274 = vadd.f32 %v901, %v1240
        %v1275 = vadd.f32 %v906, %v1245
        %v1276 = vadd.f32 %v911, %v1250
        %v1277 = vadd.f32 %v916, %v1255
        %v1278 = vadd.f32 %v921, %v1260
        %v1279 = vld [vmem:[%s2] sm:$0x1]
        %v1281 = vlaneseq
        %v1282 = vshrl.u32 %v1281, 7
        %v1283 = vsub.s32 0, %v1282
        %v1284 = vrot.slane %v1279, %v1283
        %v1286 = vadd.f32 %v1263, %v1284
        %v1287 = vadd.f32 %v1264, %v1284
        %v1288 = vadd.f32 %v1265, %v1284
        %v1289 = vadd.f32 %v1266, %v1284
        %v1290 = vadd.f32 %v1267, %v1284
        %v1291 = vadd.f32 %v1268, %v1284
        %v1292 = vadd.f32 %v1269, %v1284
        %v1293 = vadd.f32 %v1270, %v1284
        %v1294 = vadd.f32 %v1271, %v1284
        %v1295 = vadd.f32 %v1272, %v1284
        %v1296 = vadd.f32 %v1273, %v1284
        %v1297 = vadd.f32 %v1274, %v1284
        %v1298 = vadd.f32 %v1275, %v1284
        %v1299 = vadd.f32 %v1276, %v1284
        %v1300 = vadd.f32 %v1277, %v1284
        %v1301 = vadd.f32 %v1278, %v1284
        %v1302 = vxor.u32 %v1286, 2147483648
        %v1303 = vxor.u32 %v1287, 2147483648
        %v1304 = vxor.u32 %v1288, 2147483648
        %v1305 = vxor.u32 %v1289, 2147483648
        %v1306 = vxor.u32 %v1290, 2147483648
        %v1307 = vxor.u32 %v1291, 2147483648
        %v1308 = vxor.u32 %v1292, 2147483648
        %v1309 = vxor.u32 %v1293, 2147483648
        %v1310 = vxor.u32 %v1294, 2147483648
        %v1311 = vxor.u32 %v1295, 2147483648
        %v1312 = vxor.u32 %v1296, 2147483648
        %v1313 = vxor.u32 %v1297, 2147483648
        %v1314 = vxor.u32 %v1298, 2147483648
        %v1315 = vxor.u32 %v1299, 2147483648
        %v1316 = vxor.u32 %v1300, 2147483648
        %v1317 = vxor.u32 %v1301, 2147483648
        %v1318 = vmul.f32 %v1302, 1.442695
        %v1319 = vpow.pop %v1318
        %v1320 = vmul.f32 %v1303, 1.442695
        %v1321 = vpow.pop %v1320
        %v1322 = vmul.f32 %v1304, 1.442695
        %v1323 = vpow.pop %v1322
        %v1324 = vmul.f32 %v1305, 1.442695
        %v1325 = vpow.pop %v1324
        %v1326 = vmul.f32 %v1306, 1.442695
        %v1327 = vpow.pop %v1326
        %v1328 = vmul.f32 %v1307, 1.442695
        %v1329 = vpow.pop %v1328
        %v1330 = vmul.f32 %v1308, 1.442695
        %v1331 = vpow.pop %v1330
        %v1332 = vmul.f32 %v1309, 1.442695
        %v1333 = vpow.pop %v1332
        %v1334 = vmul.f32 %v1310, 1.442695
        %v1335 = vpow.pop %v1334
        %v1336 = vmul.f32 %v1311, 1.442695
        %v1337 = vpow.pop %v1336
        %v1338 = vmul.f32 %v1312, 1.442695
        %v1339 = vpow.pop %v1338
        %v1340 = vmul.f32 %v1313, 1.442695
        %v1341 = vpow.pop %v1340
        %v1342 = vmul.f32 %v1314, 1.442695
        %v1343 = vpow.pop %v1342
        %v1344 = vmul.f32 %v1315, 1.442695
        %v1345 = vpow.pop %v1344
        %v1346 = vmul.f32 %v1316, 1.442695
        %v1347 = vpow.pop %v1346
        %v1348 = vmul.f32 %v1317, 1.442695
        %v1349 = vpow.pop %v1348
        %v1350 = vadd.f32 %v1319, 1.0
        %v1351 = vadd.f32 %v1321, 1.0
        %v1352 = vadd.f32 %v1323, 1.0
        %v1353 = vadd.f32 %v1325, 1.0
        %v1354 = vadd.f32 %v1327, 1.0
        %v1355 = vadd.f32 %v1329, 1.0
        %v1356 = vadd.f32 %v1331, 1.0
        %v1357 = vadd.f32 %v1333, 1.0
        %v1358 = vadd.f32 %v1335, 1.0
        %v1359 = vadd.f32 %v1337, 1.0
        %v1360 = vadd.f32 %v1339, 1.0
        %v1361 = vadd.f32 %v1341, 1.0
        %v1362 = vadd.f32 %v1343, 1.0
        %v1363 = vadd.f32 %v1345, 1.0
        %v1364 = vadd.f32 %v1347, 1.0
        %v1365 = vadd.f32 %v1349, 1.0
        %v1366 = vrcp.pop %v1350
        %v1367 = vmul.f32 1.0, %v1366
        %v1368 = vrcp.pop %v1351
        %v1369 = vmul.f32 1.0, %v1368
        %v1370 = vrcp.pop %v1352
        %v1371 = vmul.f32 1.0, %v1370
        %v1372 = vrcp.pop %v1353
        %v1373 = vmul.f32 1.0, %v1372
        %v1374 = vrcp.pop %v1354
        %v1375 = vmul.f32 1.0, %v1374
        %v1376 = vrcp.pop %v1355
        %v1377 = vmul.f32 1.0, %v1376
        %v1378 = vrcp.pop %v1356
        %v1379 = vmul.f32 1.0, %v1378
        %v1380 = vrcp.pop %v1357
        %v1381 = vmul.f32 1.0, %v1380
        %v1382 = vrcp.pop %v1358
        %v1383 = vmul.f32 1.0, %v1382
        %v1384 = vrcp.pop %v1359
        %v1385 = vmul.f32 1.0, %v1384
        %v1386 = vrcp.pop %v1360
        %v1387 = vmul.f32 1.0, %v1386
        %v1388 = vrcp.pop %v1361
        %v1389 = vmul.f32 1.0, %v1388
        %v1390 = vrcp.pop %v1362
        %v1391 = vmul.f32 1.0, %v1390
        %v1392 = vrcp.pop %v1363
        %v1393 = vmul.f32 1.0, %v1392
        %v1394 = vrcp.pop %v1364
        %v1395 = vmul.f32 1.0, %v1394
        %v1396 = vrcp.pop %v1365
        %v1397 = vmul.f32 1.0, %v1396
        %v1398 = vmul.f32 %v1286, %v1367
        %v1399 = vmul.f32 %v1287, %v1369
        %v1400 = vmul.f32 %v1288, %v1371
        %v1401 = vmul.f32 %v1289, %v1373
        %v1402 = vmul.f32 %v1290, %v1375
        %v1403 = vmul.f32 %v1291, %v1377
        %v1404 = vmul.f32 %v1292, %v1379
        %v1405 = vmul.f32 %v1293, %v1381
        %v1406 = vmul.f32 %v1294, %v1383
        %v1407 = vmul.f32 %v1295, %v1385
        %v1408 = vmul.f32 %v1296, %v1387
        %v1409 = vmul.f32 %v1297, %v1389
        %v1410 = vmul.f32 %v1298, %v1391
        %v1411 = vmul.f32 %v1299, %v1393
        %v1412 = vmul.f32 %v1300, %v1395
        %v1413 = vmul.f32 %v1301, %v1397
        %1414 = vst [vmem:[%s177] sm:$0xff] %v1398
        %1415 = vst [vmem:[%s177 + $0x8] sm:$0xff] %v1399
        %1416 = vst [vmem:[%s177 + $0x10] sm:$0xff] %v1400
        %1417 = vst [vmem:[%s177 + $0x18] sm:$0xff] %v1401
        %1418 = vst [vmem:[%s177 + $0x20] sm:$0xff] %v1402
        %1419 = vst [vmem:[%s177 + $0x28] sm:$0xff] %v1403
        %1420 = vst [vmem:[%s177 + $0x30] sm:$0xff] %v1404
        %1421 = vst [vmem:[%s177 + $0x38] sm:$0xff] %v1405
        %1422 = vst [vmem:[%s177 + $0x40] sm:$0xff] %v1406
        %1423 = vst [vmem:[%s177 + $0x48] sm:$0xff] %v1407
        %1424 = vst [vmem:[%s177 + $0x50] sm:$0xff] %v1408
        %1425 = vst [vmem:[%s177 + $0x58] sm:$0xff] %v1409
        %1426 = vst [vmem:[%s177 + $0x60] sm:$0xff] %v1410
        %1427 = vst [vmem:[%s177 + $0x68] sm:$0xff] %v1411
        %1428 = vst [vmem:[%s177 + $0x70] sm:$0xff] %v1412
        %1429 = vst [vmem:[%s177 + $0x78] sm:$0xff] %v1413
        %s1430 = sand.u32 %s107, 1
        %s1431 = scalar_lea.sflag [#allocation3], %s1430
        %s1432 = sand.u32 %s107, 1
        %s1433 = smul.addr %s1432, 128
        %s1434 = scalar_lea.vmem [#allocation2], %s1433
        // Predicated region
        $region33: #{tpu_custom_call.1} parent=31 // pred_check
          %p1435 = pneg %p117
        $region34: #{tpu_custom_call.1} parent=31 // pred_check_branch
          %1437 = sbr.rel (%p1435) target = $region36
        $region35: #{tpu_custom_call.1} parent=31 // pred_region
          %s1438 = smul.u32 8, %s22
          %s1440 = ssub.s32 2048, 2048
          %1441 = vsyncadd %s1431, %s1440
          %s1442 = smul.addr %s1438, 2
          %s1443 = smul.addr %s21, 32
          %s1444 = sadd.s32 %s1442, %s1443
          %s1445 = smul.addr %s1444, 128
          %s1446 = scalar_lea.hbm %s3, %s1445
          %s1447 = sshll.u32 %s1434, 4
          %s1448 = int_to_ptr.vmem [resolvable:$true] %s1447
          %1453 = dma.vmem_to_hbm [thread:$0]  %s1448, 2048, %s1446, %s1431, 128, 128, 8
        $region36: #{tpu_custom_call.1} parent=31 // pred_fallthru
          _
      $region32: #{tpu_custom_call.1} parent=5 // pred_fallthru
        _
      %p1454 = scmp.le.s32.totalorder 2, %s12
      // Predicated region
      $region37: #{tpu_custom_call.1} parent=5 // pred_check
        %p1455 = pneg %p1454
      $region38: #{tpu_custom_call.1} parent=5 // pred_check_branch
        %1457 = sbr.rel (%p1455) target = $region40
      $region39: #{tpu_custom_call.1} parent=5 // pred_region
        %s1458 = ssub.s32 %s12, 2
        // Predicated region
        $region41: #{tpu_custom_call.1} parent=39 // pred_check
          %p1459 = pneg %p123
        $region42: #{tpu_custom_call.1} parent=39 // pred_check_branch
          %1461 = sbr.rel (%p1459) target = $region44
        $region43: #{tpu_custom_call.1} parent=39 // pred_region
          %s1462 = sand.u32 %s108, 1
          %s1463 = scalar_lea.sflag [#allocation3], %s1462
          %s1464 = sand.u32 %s108, 1
          %s1465 = smul.addr %s1464, 128
          %s1466 = scalar_lea.vmem [#allocation2], %s1465
          %1467 = dma.done %s1463, 2048
        $region44: #{tpu_custom_call.1} parent=39 // pred_fallthru
          _
      $region40: #{tpu_custom_call.1} parent=5 // pred_fallthru
        _
    $region6: #{tpu_custom_call.1} parent=1 // loop_footer
      %s16 = sadd.s32 1, %s12
    $region7: #{tpu_custom_call.1} parent=1 // loop_footer_branch
      %11 = sbr.rel target = $region3
    $region8: #{tpu_custom_call.1} parent=1 // loop_exit
      _
    %1468 = vsyncpa [#allocation3], 1
    %s1469 = scalar_lea.sflag [#allocation3], 1
    %1470 = vsyncpa %s1469, 1

</llo_original>
